<compile_context>
chip_gen: v6e
topology: v6e:2x2x1
jax: 0.10.0
libtpu: 0.0.40
codegen_flags: <defaults>
</compile_context>

<pallas_src>
import functools

import jax
import jax.numpy as jnp
from jax.experimental import pallas as pl
from jax.experimental.pallas import tpu as pltpu

CLAMP = 1.0          # module default clamp=1
ATAN_COEF = 0.636    # literal constant from the PyTorch module (not 2/pi)

_VMEM_LIMIT = 32 * 1024 * 1024   # conservative; fits v5e/v6e/v7x scoped VMEM


def _round_up(x, m):
    return ((x + m - 1) // m) * m


def _cdiv(a, b):
    return (a + b - 1) // b


# ----------------------------------------------------------------------------
# In-kernel float32 atan (Cephes-style), built from VPU-safe ops only
# (abs / mul / add / div / select), so it lowers cleanly in Mosaic.
# ----------------------------------------------------------------------------
def _atan_f32(x):
    t3p8 = 2.414213562373095   # tan(3*pi/8)
    tp8 = 0.41421356237309503  # tan(pi/8)
    sign = jnp.where(x < 0.0, -1.0, 1.0).astype(x.dtype)
    ax = jnp.abs(x)
    big = ax > t3p8
    mid = jnp.logical_and(jnp.logical_not(big), ax > tp8)
    y_off = jnp.where(big, jnp.float32(jnp.pi / 2),
                      jnp.where(mid, jnp.float32(jnp.pi / 4), 0.0))
    safe_ax = jnp.maximum(ax, 1e-30)
    xr = jnp.where(big, -1.0 / safe_ax,
                   jnp.where(mid, (ax - 1.0) / (ax + 1.0), ax))
    z = xr * xr
    p = ((8.05374449538e-2 * z - 1.38776856032e-1) * z
         + 1.99777106478e-1) * z - 3.33329491539e-1
    return sign * (y_off + p * z * xr + xr)


# ----------------------------------------------------------------------------
# Pallas kernel 1: 3x3 same-conv without im2col.
#   x_ref:  (1, Cin, TM)   main flat window [o0, o0+TM)
#   xh_ref: (1, Cin, TH2)  halo window      [o0+TM, o0+TM+TH2)
#   w_ref:  (9, Cout, Cin) per-tap weights
#   b_ref:  (Cout, 1)      bias
#   o_ref:  (1, Cout, TM)  lane-dense output tile of the shifted flat grid
# ----------------------------------------------------------------------------
def _conv3x3_kernel(x_ref, xh_ref, w_ref, b_ref, o_ref, *, shifts, tm):
    cout = o_ref.shape[1]
    xa = jnp.concatenate([x_ref[0], xh_ref[0]], axis=1)      # (Cin, TM+TH2)
    acc = jnp.zeros((cout, tm), jnp.float32)
    for t, sh in enumerate(shifts):                          # 9 static taps
        xs = xa[:, sh:sh + tm]                               # (Cin, TM) static slice
        acc = acc + jnp.dot(w_ref[t], xs,
                            preferred_element_type=jnp.float32)
    o_ref[0] = acc + b_ref[...]


def conv3x3_pallas(x, w, b, *, tm_target=2048):
    """3x3 conv, stride 1, padding 1.  x: (N,Cin,H,W), w: (Cout,Cin,3,3)."""
    N, C, H, W = x.shape
    Cout = w.shape[0]
    Hin, Win = H + 2, W + 2
    L_out = H * Win                       # shifted-grid output (keeps 2 junk cols/row)
    th2 = _round_up(2 * Win + 2, 128)     # halo block: covers the max tap shift
    k = max(1, min(tm_target // th2, _cdiv(L_out, th2)))
    tm = k * th2                          # lane tile (multiple of 128)
    L_out_pad = _round_up(L_out, tm)
    grid_m = L_out_pad // tm
    L_in_pad = L_out_pad + tm             # main + halo blocks always in-bounds

    # one cheap pad + reshape (vs. the previous 9x im2col slab + transposes)
    xp = jnp.pad(x.astype(jnp.float32), ((0, 0), (0, 0), (1, 1), (1, 1)))
    xf = xp.reshape(N, C, Hin * Win)
    xf = jnp.pad(xf, ((0, 0), (0, 0), (0, L_in_pad - Hin * Win)))

    wt = jnp.transpose(w.astype(jnp.float32), (2, 3, 0, 1)).reshape(9, Cout, C)
    bias = b.astype(jnp.float32).reshape(Cout, 1)

    shifts = tuple(di * Win + dj for di in range(3) for dj in range(3))
    kernel = functools.partial(_conv3x3_kernel, shifts=shifts, tm=tm)

    out_flat = pl.pallas_call(
        kernel,
        out_shape=jax.ShapeDtypeStruct((N, Cout, L_out_pad), jnp.float32),
        grid=(N, grid_m),
        in_specs=[
            pl.BlockSpec((1, C, tm), lambda n, m: (n, 0, m)),              # main
            pl.BlockSpec((1, C, th2), lambda n, m: (n, 0, (m + 1) * k)),   # halo
            pl.BlockSpec((9, Cout, C), lambda n, m: (0, 0, 0)),            # weights
            pl.BlockSpec((Cout, 1), lambda n, m: (0, 0)),                  # bias
        ],
        out_specs=pl.BlockSpec((1, Cout, tm), lambda n, m: (n, 0, m)),
        compiler_params=pltpu.CompilerParams(
            dimension_semantics=("parallel", "parallel"),
            vmem_limit_bytes=_VMEM_LIMIT),
    )(xf, xf, wt, bias)

    # strip junk tail + junk columns (cheap XLA slice on a small tensor)
    out = out_flat[:, :, :L_out].reshape(N, Cout, H, Win)[:, :, :, :W]
    return out


# ----------------------------------------------------------------------------
# Pallas kernel 2: affine coupling + logdet.
#   e = clamp * 0.636 * atan(raw/clamp)  (== log(scale), reused for logdet)
#   encode: z2' = exp(e) * z2 + shift ; decode: z2' = (z2 - shift) * exp(-e)
#   logdet = sum(e) over (C, H, W)   (positive in both directions, as in spec)
# ----------------------------------------------------------------------------
def _affine_kernel(reverse, s_ref, t_ref, z_ref, o_ref, ld_ref):
    e = jnp.float32(CLAMP * ATAN_COEF) * _atan_f32(
        s_ref[0] * jnp.float32(1.0 / CLAMP))
    if reverse:
        o_ref[0] = (z_ref[0] - t_ref[0]) * jnp.exp(-e)   # 1/scale = exp(-e)
    else:
        o_ref[0] = jnp.exp(e) * z_ref[0] + t_ref[0]

    @pl.when(pl.program_id(1) == 0)
    def _():
        ld_ref[...] = jnp.zeros_like(ld_ref)

    # per-sample resident accumulator (scalar broadcast into (1,8,128) block)
    ld_ref[...] += jnp.sum(e)


def _pick_affine_tiles(F, lane_cap=1024, elem_target=64 * 1024):
    """Pick (LB, rows, RB): LB | F, 128 | LB, rows = F//LB, RB | rows,
    RB a multiple of 8 (or == rows)."""
    lb = None
    d = 128
    while d <= min(lane_cap, F):
        if F % d == 0 and F // d >= 8:
            lb = d
        d += 128
    if lb is None:
        d = 128
        while d <= min(lane_cap, F):
            if F % d == 0:
                lb = d
            d += 128
    if lb is None:
        lb = F
    rows = F // lb
    rb = rows
    if rows % 8 == 0:
        cap = min(rows, max(8, (elem_target // lb) // 8 * 8))
        rb = 8
        r = 16
        while r <= cap:
            if rows % r == 0:
                rb = r
            r += 8
    return lb, rows, rb


def affine_pallas(raw_scale, shift, z2, reverse=False):
    N, C, H, W = z2.shape
    F = C * H * W
    lb, rows, rb = _pick_affine_tiles(F)
    grid_r = rows // rb

    s3 = raw_scale.astype(jnp.float32).reshape(N, rows, lb)
    t3 = shift.astype(jnp.float32).reshape(N, rows, lb)
    z3 = z2.astype(jnp.float32).reshape(N, rows, lb)

    blk = pl.BlockSpec((1, rb, lb), lambda n, r: (n, r, 0))
    z_out, ld = pl.pallas_call(
        functools.partial(_affine_kernel, reverse),
        out_shape=(jax.ShapeDtypeStruct((N, rows, lb), jnp.float32),
                   jax.ShapeDtypeStruct((N, 8, 128), jnp.float32)),
        grid=(N, grid_r),
        in_specs=[blk, blk, blk],
        out_specs=(blk,
                   pl.BlockSpec((1, 8, 128), lambda n, r: (n, 0, 0))),
        compiler_params=pltpu.CompilerParams(
            dimension_semantics=("parallel", "arbitrary"),
            vmem_limit_bytes=_VMEM_LIMIT),
    )(s3, t3, z3)
    return z_out.reshape(N, C, H, W), ld[:, 0, 0]


# ----------------------------------------------------------------------------
# Extractor (HIN_CA_Block_) -- source not provided with the module.
# TODO(synk): HIN_CA_Block_ definition unavailable; approximated as
#             conv3x3 -> Half-Instance-Norm -> ReLU -> conv3x3 -> chunk(2, dim=1);
#             the channel-attention (CA) sub-block is omitted.  The HIN
#             statistics / ReLU are left to XLA (cheap vs. the convs).
# ----------------------------------------------------------------------------
def init_params(key, in_channel, hidden_channel):
    k1, k2, k3 = jax.random.split(key, 3)
    return {
        "w1": 0.1 * jax.random.normal(
            k1, (hidden_channel, in_channel, 3, 3), jnp.float32),
        "b1": jnp.zeros((hidden_channel,), jnp.float32),
        "gamma": jnp.ones((hidden_channel // 2,), jnp.float32),
        "beta": jnp.zeros((hidden_channel // 2,), jnp.float32),
        "w2": 0.1 * jax.random.normal(
            k2, (2 * in_channel, hidden_channel, 3, 3), jnp.float32),
        "b2": 0.05 * jax.random.normal(k3, (2 * in_channel,), jnp.float32),
    }


def extractor(params, x):
    h = conv3x3_pallas(x, params["w1"], params["b1"])
    Ch = h.shape[1]
    h1, h2 = h[:, :Ch // 2], h[:, Ch // 2:]
    mu = jnp.mean(h1, axis=(2, 3), keepdims=True)
    var = jnp.var(h1, axis=(2, 3), keepdims=True)
    h1 = (h1 - mu) * jax.lax.rsqrt(var + 1e-5)
    h1 = (h1 * params["gamma"][None, :, None, None]
          + params["beta"][None, :, None, None])
    h = jnp.maximum(jnp.concatenate([h1, h2], axis=1), 0.0)
    out = conv3x3_pallas(h, params["w2"], params["b2"])
    Co = out.shape[1]
    return out[:, :Co // 2], out[:, Co // 2:]   # (raw_scale, shift)


def self_linear_affine(params, z1, z2, reverse=False):
    """Matches SelfLinearAffine.forward: returns (z1, z2', logdet[N])."""
    raw_scale, shift = extractor(params, z1)
    z2_out, logdet = affine_pallas(raw_scale, shift, z2, reverse=reverse)
    return z1, z2_out, logdet


if __name__ == "__main__":
    key = jax.random.PRNGKey(0)
    kp, kz1, kz2, kw, kb = jax.random.split(key, 5)

    in_channel, hidden_channel = 4, 8
    N, H, W = 2, 16, 16

    params = init_params(kp, in_channel, hidden_channel)
    z1 = jax.random.normal(kz1, (N, in_channel, H, W), jnp.float32)
    z2 = jax.random.normal(kz2, (N, in_channel, H, W), jnp.float32)

    # --- unit check: Pallas conv vs XLA reference conv ---------------------
    wt = 0.1 * jax.random.normal(kw, (hidden_channel, in_channel, 3, 3),
                                 jnp.float32)
    bt = 0.05 * jax.random.normal(kb, (hidden_channel,), jnp.float32)
    conv_p = jax.block_until_ready(conv3x3_pallas(z1, wt, bt))
    conv_r = jax.lax.conv_general_dilated(
        z1, wt, (1, 1), "SAME",
        dimension_numbers=("NCHW", "OIHW", "NCHW")) + bt[None, :, None, None]
    assert float(jnp.max(jnp.abs(conv_p - conv_r))) < 5e-2

    # --- full module: encode / decode round trip ---------------------------
    enc = jax.jit(functools.partial(self_linear_affine, reverse=False))
    dec = jax.jit(functools.partial(self_linear_affine, reverse=True))
    z1_o, z2_enc, logdet = jax.block_until_ready(enc(params, z1, z2))
    _, z2_dec, logdet2 = jax.block_until_ready(dec(params, z1, z2_enc))

    # --- affine kernel vs pure-JAX reference (same extractor output) -------
    raw_s, sh = extractor(params, z1)
    scale_ref = jnp.exp(CLAMP * ATAN_COEF * jnp.arctan(raw_s / CLAMP))
    z2_ref = scale_ref * z2 + sh
    logdet_ref = jnp.sum(jnp.log(scale_ref), axis=(1, 2, 3))
    assert float(jnp.max(jnp.abs(z2_enc - z2_ref))) < 1e-3
    assert float(jnp.max(jnp.abs(logdet - logdet_ref))) < 1e-2

    assert z2_enc.shape == z2.shape
    assert logdet.shape == (N,)
    assert float(jnp.max(jnp.abs(z2_dec - z2))) < 1e-4
    print("KERNEL_OK")
</pallas_src>

<mosaic_0001>
module attributes {stable_mosaic.version = 11 : i64} {
  func.func @_conv3x3_kernel(%arg0: i32, %arg1: i32, %arg2: memref<1x4x384xf32, #tpu.memory_space<vmem>>, %arg3: memref<1x4x128xf32, #tpu.memory_space<vmem>>, %arg4: memref<9x8x4xf32, #tpu.memory_space<vmem>>, %arg5: memref<8x1xf32, #tpu.memory_space<vmem>>, %arg6: memref<1x8x384xf32, #tpu.memory_space<vmem>>) attributes {dimension_semantics = [#tpu.dimension_semantics<parallel>, #tpu.dimension_semantics<parallel>], iteration_bounds = array<i64: 2, 1>, scalar_prefetch = 0 : i64, scratch_operands = 0 : i64, tpu.core_type = #tpu.core_type<tc>, window_params = [{transform_indices = @transform_0, window_bounds = array<i64: 1, 4, 384>}, {transform_indices = @transform_1, window_bounds = array<i64: 1, 4, 128>}, {pipeline_mode = #tpu.pipeline_mode<synchronous>, transform_indices = @transform_2, window_bounds = array<i64: 9, 8, 4>}, {pipeline_mode = #tpu.pipeline_mode<synchronous>, transform_indices = @transform_3, window_bounds = array<i64: 8, 1>}, {transform_indices = @transform_4, window_bounds = array<i64: 1, 8, 384>}]} {
    %c0 = arith.constant 0 : index
    %c0_0 = arith.constant 0 : index
    %c0_1 = arith.constant 0 : index
    %0 = vector.load %arg2[%c0, %c0_0, %c0_1] : memref<1x4x384xf32, #tpu.memory_space<vmem>>, vector<1x4x384xf32>
    %1 = vector.shape_cast %0 : vector<1x4x384xf32> to vector<4x384xf32>
    %c0_2 = arith.constant 0 : index
    %c0_3 = arith.constant 0 : index
    %c0_4 = arith.constant 0 : index
    %2 = vector.load %arg3[%c0_2, %c0_3, %c0_4] : memref<1x4x128xf32, #tpu.memory_space<vmem>>, vector<1x4x128xf32>
    %3 = vector.shape_cast %2 : vector<1x4x128xf32> to vector<4x128xf32>
    %4 = tpu.concatenate %1, %3 in 1 : vector<4x384xf32>, vector<4x128xf32> -> vector<4x512xf32>
    %cst = arith.constant 0.000000e+00 : f32
    %5 = vector.broadcast %cst : f32 to vector<8x384xf32>
    %6 = vector.extract_strided_slice %4 {offsets = [0, 0], sizes = [4, 384], strides = [1, 1]} : vector<4x512xf32> to vector<4x384xf32>
    %c0_5 = arith.constant 0 : index
    %c0_6 = arith.constant 0 : index
    %c0_7 = arith.constant 0 : index
    %7 = vector.load %arg4[%c0_5, %c0_6, %c0_7] : memref<9x8x4xf32, #tpu.memory_space<vmem>>, vector<1x8x4xf32>
    %8 = vector.shape_cast %7 : vector<1x8x4xf32> to vector<8x4xf32>
    %cst_8 = arith.constant dense<0.000000e+00> : vector<8x384xf32>
    %9 = tpu.matmul %8, %6, %cst_8 {dimension_numbers = #tpu.dot_dimension_numbers<[1], [0], [0], [1], [0, 0, 1, 1], [], []>} : vector<8x4xf32>, vector<4x384xf32>, vector<8x384xf32> -> vector<8x384xf32>
    %10 = arith.addf %5, %9 : vector<8x384xf32>
    %11 = vector.extract_strided_slice %4 {offsets = [0, 1], sizes = [4, 384], strides = [1, 1]} : vector<4x512xf32> to vector<4x384xf32>
    %c1 = arith.constant 1 : index
    %c0_9 = arith.constant 0 : index
    %c0_10 = arith.constant 0 : index
    %12 = vector.load %arg4[%c1, %c0_9, %c0_10] : memref<9x8x4xf32, #tpu.memory_space<vmem>>, vector<1x8x4xf32>
    %13 = vector.shape_cast %12 : vector<1x8x4xf32> to vector<8x4xf32>
    %cst_11 = arith.constant dense<0.000000e+00> : vector<8x384xf32>
    %14 = tpu.matmul %13, %11, %cst_11 {dimension_numbers = #tpu.dot_dimension_numbers<[1], [0], [0], [1], [0, 0, 1, 1], [], []>} : vector<8x4xf32>, vector<4x384xf32>, vector<8x384xf32> -> vector<8x384xf32>
    %15 = arith.addf %10, %14 : vector<8x384xf32>
    %16 = vector.extract_strided_slice %4 {offsets = [0, 2], sizes = [4, 384], strides = [1, 1]} : vector<4x512xf32> to vector<4x384xf32>
    %c2 = arith.constant 2 : index
    %c0_12 = arith.constant 0 : index
    %c0_13 = arith.constant 0 : index
    %17 = vector.load %arg4[%c2, %c0_12, %c0_13] : memref<9x8x4xf32, #tpu.memory_space<vmem>>, vector<1x8x4xf32>
    %18 = vector.shape_cast %17 : vector<1x8x4xf32> to vector<8x4xf32>
    %cst_14 = arith.constant dense<0.000000e+00> : vector<8x384xf32>
    %19 = tpu.matmul %18, %16, %cst_14 {dimension_numbers = #tpu.dot_dimension_numbers<[1], [0], [0], [1], [0, 0, 1, 1], [], []>} : vector<8x4xf32>, vector<4x384xf32>, vector<8x384xf32> -> vector<8x384xf32>
    %20 = arith.addf %15, %19 : vector<8x384xf32>
    %21 = vector.extract_strided_slice %4 {offsets = [0, 18], sizes = [4, 384], strides = [1, 1]} : vector<4x512xf32> to vector<4x384xf32>
    %c3 = arith.constant 3 : index
    %c0_15 = arith.constant 0 : index
    %c0_16 = arith.constant 0 : index
    %22 = vector.load %arg4[%c3, %c0_15, %c0_16] : memref<9x8x4xf32, #tpu.memory_space<vmem>>, vector<1x8x4xf32>
    %23 = vector.shape_cast %22 : vector<1x8x4xf32> to vector<8x4xf32>
    %cst_17 = arith.constant dense<0.000000e+00> : vector<8x384xf32>
    %24 = tpu.matmul %23, %21, %cst_17 {dimension_numbers = #tpu.dot_dimension_numbers<[1], [0], [0], [1], [0, 0, 1, 1], [], []>} : vector<8x4xf32>, vector<4x384xf32>, vector<8x384xf32> -> vector<8x384xf32>
    %25 = arith.addf %20, %24 : vector<8x384xf32>
    %26 = vector.extract_strided_slice %4 {offsets = [0, 19], sizes = [4, 384], strides = [1, 1]} : vector<4x512xf32> to vector<4x384xf32>
    %c4 = arith.constant 4 : index
    %c0_18 = arith.constant 0 : index
    %c0_19 = arith.constant 0 : index
    %27 = vector.load %arg4[%c4, %c0_18, %c0_19] : memref<9x8x4xf32, #tpu.memory_space<vmem>>, vector<1x8x4xf32>
    %28 = vector.shape_cast %27 : vector<1x8x4xf32> to vector<8x4xf32>
    %cst_20 = arith.constant dense<0.000000e+00> : vector<8x384xf32>
    %29 = tpu.matmul %28, %26, %cst_20 {dimension_numbers = #tpu.dot_dimension_numbers<[1], [0], [0], [1], [0, 0, 1, 1], [], []>} : vector<8x4xf32>, vector<4x384xf32>, vector<8x384xf32> -> vector<8x384xf32>
    %30 = arith.addf %25, %29 : vector<8x384xf32>
    %31 = vector.extract_strided_slice %4 {offsets = [0, 20], sizes = [4, 384], strides = [1, 1]} : vector<4x512xf32> to vector<4x384xf32>
    %c5 = arith.constant 5 : index
    %c0_21 = arith.constant 0 : index
    %c0_22 = arith.constant 0 : index
    %32 = vector.load %arg4[%c5, %c0_21, %c0_22] : memref<9x8x4xf32, #tpu.memory_space<vmem>>, vector<1x8x4xf32>
    %33 = vector.shape_cast %32 : vector<1x8x4xf32> to vector<8x4xf32>
    %cst_23 = arith.constant dense<0.000000e+00> : vector<8x384xf32>
    %34 = tpu.matmul %33, %31, %cst_23 {dimension_numbers = #tpu.dot_dimension_numbers<[1], [0], [0], [1], [0, 0, 1, 1], [], []>} : vector<8x4xf32>, vector<4x384xf32>, vector<8x384xf32> -> vector<8x384xf32>
    %35 = arith.addf %30, %34 : vector<8x384xf32>
    %36 = vector.extract_strided_slice %4 {offsets = [0, 36], sizes = [4, 384], strides = [1, 1]} : vector<4x512xf32> to vector<4x384xf32>
    %c6 = arith.constant 6 : index
    %c0_24 = arith.constant 0 : index
    %c0_25 = arith.constant 0 : index
    %37 = vector.load %arg4[%c6, %c0_24, %c0_25] : memref<9x8x4xf32, #tpu.memory_space<vmem>>, vector<1x8x4xf32>
    %38 = vector.shape_cast %37 : vector<1x8x4xf32> to vector<8x4xf32>
    %cst_26 = arith.constant dense<0.000000e+00> : vector<8x384xf32>
    %39 = tpu.matmul %38, %36, %cst_26 {dimension_numbers = #tpu.dot_dimension_numbers<[1], [0], [0], [1], [0, 0, 1, 1], [], []>} : vector<8x4xf32>, vector<4x384xf32>, vector<8x384xf32> -> vector<8x384xf32>
    %40 = arith.addf %35, %39 : vector<8x384xf32>
    %41 = vector.extract_strided_slice %4 {offsets = [0, 37], sizes = [4, 384], strides = [1, 1]} : vector<4x512xf32> to vector<4x384xf32>
    %c7 = arith.constant 7 : index
    %c0_27 = arith.constant 0 : index
    %c0_28 = arith.constant 0 : index
    %42 = vector.load %arg4[%c7, %c0_27, %c0_28] : memref<9x8x4xf32, #tpu.memory_space<vmem>>, vector<1x8x4xf32>
    %43 = vector.shape_cast %42 : vector<1x8x4xf32> to vector<8x4xf32>
    %cst_29 = arith.constant dense<0.000000e+00> : vector<8x384xf32>
    %44 = tpu.matmul %43, %41, %cst_29 {dimension_numbers = #tpu.dot_dimension_numbers<[1], [0], [0], [1], [0, 0, 1, 1], [], []>} : vector<8x4xf32>, vector<4x384xf32>, vector<8x384xf32> -> vector<8x384xf32>
    %45 = arith.addf %40, %44 : vector<8x384xf32>
    %46 = vector.extract_strided_slice %4 {offsets = [0, 38], sizes = [4, 384], strides = [1, 1]} : vector<4x512xf32> to vector<4x384xf32>
    %c8 = arith.constant 8 : index
    %c0_30 = arith.constant 0 : index
    %c0_31 = arith.constant 0 : index
    %47 = vector.load %arg4[%c8, %c0_30, %c0_31] : memref<9x8x4xf32, #tpu.memory_space<vmem>>, vector<1x8x4xf32>
    %48 = vector.shape_cast %47 : vector<1x8x4xf32> to vector<8x4xf32>
    %cst_32 = arith.constant dense<0.000000e+00> : vector<8x384xf32>
    %49 = tpu.matmul %48, %46, %cst_32 {dimension_numbers = #tpu.dot_dimension_numbers<[1], [0], [0], [1], [0, 0, 1, 1], [], []>} : vector<8x4xf32>, vector<4x384xf32>, vector<8x384xf32> -> vector<8x384xf32>
    %50 = arith.addf %45, %49 : vector<8x384xf32>
    %c0_33 = arith.constant 0 : index
    %c0_34 = arith.constant 0 : index
    %51 = vector.load %arg5[%c0_33, %c0_34] : memref<8x1xf32, #tpu.memory_space<vmem>>, vector<8x1xf32>
    %52 = vector.broadcast %51 : vector<8x1xf32> to vector<8x384xf32>
    %53 = arith.addf %50, %52 : vector<8x384xf32>
    %c0_35 = arith.constant 0 : index
    %c0_36 = arith.constant 0 : index
    %c0_37 = arith.constant 0 : index
    %54 = vector.load %arg6[%c0_35, %c0_36, %c0_37] : memref<1x8x384xf32, #tpu.memory_space<vmem>>, vector<1x8x384xf32>
    %55 = vector.shape_cast %54 : vector<1x8x384xf32> to vector<8x384xf32>
    %56 = vector.shape_cast %53 : vector<8x384xf32> to vector<1x8x384xf32>
    tpu.vector_store %arg6[%c0_35, %c0_36, %c0_37], %56 {strides = array<i32>} : memref<1x8x384xf32, #tpu.memory_space<vmem>>, vector<1x8x384xf32>,
    return
  }
  func.func @transform_0(%arg0: i32, %arg1: i32) -> (i32, i32, i32) {
    %c0_i32 = arith.constant 0 : i32
    %c0_i32_0 = arith.constant 0 : i32
    return %arg0, %c0_i32, %arg1 : i32, i32, i32
  }
  func.func @transform_1(%arg0: i32, %arg1: i32) -> (i32, i32, i32) {
    %c1_i32 = arith.constant 1 : i32
    %0 = arith.addi %arg1, %c1_i32 : i32
    %c3_i32 = arith.constant 3 : i32
    %1 = arith.muli %0, %c3_i32 : i32
    %c0_i32 = arith.constant 0 : i32
    %c0_i32_0 = arith.constant 0 : i32
    return %arg0, %c0_i32, %1 : i32, i32, i32
  }
  func.func @transform_2(%arg0: i32, %arg1: i32) -> (i32, i32, i32) {
    %c0_i32 = arith.constant 0 : i32
    %c0_i32_0 = arith.constant 0 : i32
    %c0_i32_1 = arith.constant 0 : i32
    %c0_i32_2 = arith.constant 0 : i32
    return %c0_i32, %c0_i32_0, %c0_i32_1 : i32, i32, i32
  }
  func.func @transform_3(%arg0: i32, %arg1: i32) -> (i32, i32) {
    %c0_i32 = arith.constant 0 : i32
    %c0_i32_0 = arith.constant 0 : i32
    %c0_i32_1 = arith.constant 0 : i32
    return %c0_i32, %c0_i32_0 : i32, i32
  }
  func.func @transform_4(%arg0: i32, %arg1: i32) -> (i32, i32, i32) {
    %c0_i32 = arith.constant 0 : i32
    %c0_i32_0 = arith.constant 0 : i32
    return %arg0, %c0_i32, %arg1 : i32, i32, i32
  }
}

</mosaic_0001>

<llo_original>
// kernel: tpu_custom_call.1
$region0: #{tpu_custom_call.1}
  #allocation0 [shape = 'u32[]', space=smem, size = 0x4, offset = 0x4, fixed_abs, tag = 'smem constant byte address 0x4 - core index']
  #allocation1 [shape = 'u32[144,128]{1,0:T(1,128)}', space=vmem, size = 0x12000, scoped, tag = 'internal scratch']
  %s0 = inlined_call_operand.vmem [shape: f32[2,4,768], index: 0, kind: input, shape index: {}]
  %s1 = inlined_call_operand.vmem [shape: f32[2,4,768], index: 1, kind: input, shape index: {}]
  %s2 = inlined_call_operand.vmem [shape: f32[9,8,4], index: 2, kind: input, shape index: {}]
  %s3 = inlined_call_operand.vmem [shape: f32[8,1], index: 3, kind: input, shape index: {}]
  %s4 = inlined_call_operand.hbm [shape: f32[2,8,384], index: 4, kind: output, shape index: {}]
  %s5 = sld [smem:[#allocation0]]
  $region49: #{tpu_custom_call.1} parent=0
    _
  %s7 = ssub.s32 1, %s5
  %s8 = scalar_select 0, %s7, %s5
  $region1: #{tpu_custom_call.1} parent=0
    #allocation2 [shape = 'u8[24576]{0}', space=vmem, size = 0x6000, scoped, tag = 'output window, operand 0']
    #allocation3 [shape = 's32[2]{0}', space=sflag, size = 0x8, scoped, tag = 'scoped memory for tpu_custom_call.1']
    %9 = vsyncpa [#allocation3], 0
    %s10 = scalar_lea.sflag [#allocation3], 1
    %11 = vsyncpa %s10, 0
    loop: start=0, step=1, limit=4
    $region2: #{tpu_custom_call.1} parent=1 // loop_pre_header
      _
    $region3: #{tpu_custom_call.1} parent=1 // loop_header
      %s13 = sphi 0, %s17
      %p14 = scmp.ge.s32.totalorder %s13, 4
      %s20 = sphi 0, %s32
      %s21 = sphi 0, %s28
      %s22 = sphi 0, %s20
      %s23 = sphi 0, %s21
      %s24 = sphi 0, %s22
      %s25 = sphi 0, %s23
      %s37 = sphi 0, %s39
      %s40 = sphi 0, %s37
      %s41 = sphi 0, %s40
      %s57 = sphi 0, %s41
      %s69 = sphi 0, %s71
      %s72 = sphi 0, %s69
      %s73 = sphi 0, %s72
      %s89 = sphi 0, %s73
      %s93 = sphi 0, %s93
      %s95 = sphi 0, %s93
      %s96 = sphi 0, %s95
      %s110 = sphi 0, %s96
      %s114 = sphi 0, %s114
      %s116 = sphi 0, %s114
      %s117 = sphi 0, %s116
      %s131 = sphi 0, %s117
      %s139 = sphi 0, %s141
      %s142 = sphi 0, %s139
      %s143 = sphi 0, %s142
      %s159 = sphi 0, %s143
    $region4: #{tpu_custom_call.1} parent=1 // loop_header_branch
      %16 = sbr.rel (%p14) target = $region8
    $region5: #{tpu_custom_call.1} parent=1 // loop_body
      %s18 = ssub.s32 %s13, 1
      %s19 = ssub.s32 %s13, 2
      %s26 = sadd.s32 1, %s21
      %p27 = scmp.ge.s32.totalorder %s26, 1
      %s28 = scalar_select %p27, 0, %s26
      %s29 = sadd.s32 1, %s20
      %s30 = scalar_select %p27, %s29, %s20
      %p31 = scmp.ge.s32.totalorder %s30, 2
      %s32 = scalar_select %p31, 0, %s30
      %s33 = ssub.s32 %s20, %s32
      %s34 = ssub.s32 %s21, %s28
      %s35 = sor.u32 %s33, %s34
      %p36 = scmp.eq.s32.totalorder %s35, 0
      %s38 = sadd.s32 %s37, 1
      %s39 = scalar_select %p36, %s37, %s38
      %p42 = pneg %p36
      %p43 = scmp.eq.s32.totalorder %s13, 1
      %p44 = por %p42, %p43
      %p45 = scmp.ne.s32.totalorder %s37, %s40
      %p46 = scmp.eq.s32.totalorder %s13, 0
      %p47 = por %p45, %p46
      %p48 = scmp.ne.s32.totalorder %s37, %s40
      %p49 = scmp.eq.s32.totalorder %s18, 1
      %p50 = por %p48, %p49
      %p51 = scmp.ne.s32.totalorder %s40, %s41
      %p52 = scmp.eq.s32.totalorder %s18, 0
      %p53 = por %p51, %p52
      %p54 = scmp.ne.s32.totalorder %s40, %s41
      %p55 = scmp.eq.s32.totalorder %s19, 1
      %p56 = por %p54, %p55
      %p58 = scmp.ne.s32.totalorder %s41, %s57
      %p59 = scmp.eq.s32.totalorder %s19, 0
      %p60 = por %p58, %p59
      %s61 = sadd.s32 %s21, 1
      %s62 = smul.u32 %s61, 3
      %s63 = sadd.s32 %s28, 1
      %s64 = smul.u32 %s63, 3
      %s65 = ssub.s32 %s20, %s32
      %s66 = ssub.s32 %s62, %s64
      %s67 = sor.u32 %s65, %s66
      %p68 = scmp.eq.s32.totalorder %s67, 0
      %s70 = sadd.s32 %s69, 1
      %s71 = scalar_select %p68, %s69, %s70
      %p74 = pneg %p68
      %p75 = scmp.eq.s32.totalorder %s13, 1
      %p76 = por %p74, %p75
      %p77 = scmp.ne.s32.totalorder %s69, %s72
      %p78 = scmp.eq.s32.totalorder %s13, 0
      %p79 = por %p77, %p78
      %p80 = scmp.ne.s32.totalorder %s69, %s72
      %p81 = scmp.eq.s32.totalorder %s18, 1
      %p82 = por %p80, %p81
      %p83 = scmp.ne.s32.totalorder %s72, %s73
      %p84 = scmp.eq.s32.totalorder %s18, 0
      %p85 = por %p83, %p84
      %p86 = scmp.ne.s32.totalorder %s72, %s73
      %p87 = scmp.eq.s32.totalorder %s19, 1
      %p88 = por %p86, %p87
      %p90 = scmp.ne.s32.totalorder %s73, %s89
      %p91 = scmp.eq.s32.totalorder %s19, 0
      %p92 = por %p90, %p91
      %s94 = sadd.s32 %s93, 1
      %p97 = scmp.eq.s32.totalorder %s13, 1
      %p98 = scmp.ne.s32.totalorder %s93, %s95
      %p99 = scmp.eq.s32.totalorder %s13, 0
      %p100 = por %p98, %p99
      %p101 = scmp.ne.s32.totalorder %s93, %s95
      %p102 = scmp.eq.s32.totalorder %s18, 1
      %p103 = por %p101, %p102
      %p104 = scmp.ne.s32.totalorder %s95, %s96
      %p105 = scmp.eq.s32.totalorder %s18, 0
      %p106 = por %p104, %p105
      %p107 = scmp.ne.s32.totalorder %s95, %s96
      %p108 = scmp.eq.s32.totalorder %s19, 1
      %p109 = por %p107, %p108
      %p111 = scmp.ne.s32.totalorder %s96, %s110
      %p112 = scmp.eq.s32.totalorder %s19, 0
      %p113 = por %p111, %p112
      %s115 = sadd.s32 %s114, 1
      %p118 = scmp.eq.s32.totalorder %s13, 1
      %p119 = scmp.ne.s32.totalorder %s114, %s116
      %p120 = scmp.eq.s32.totalorder %s13, 0
      %p121 = por %p119, %p120
      %p122 = scmp.ne.s32.totalorder %s114, %s116
      %p123 = scmp.eq.s32.totalorder %s18, 1
      %p124 = por %p122, %p123
      %p125 = scmp.ne.s32.totalorder %s116, %s117
      %p126 = scmp.eq.s32.totalorder %s18, 0
      %p127 = por %p125, %p126
      %p128 = scmp.ne.s32.totalorder %s116, %s117
      %p129 = scmp.eq.s32.totalorder %s19, 1
      %p130 = por %p128, %p129
      %p132 = scmp.ne.s32.totalorder %s117, %s131
      %p133 = scmp.eq.s32.totalorder %s19, 0
      %p134 = por %p132, %p133
      %s135 = ssub.s32 %s20, %s32
      %s136 = ssub.s32 %s21, %s28
      %s137 = sor.u32 %s135, %s136
      %p138 = scmp.eq.s32.totalorder %s137, 0
      %s140 = sadd.s32 %s139, 1
      %s141 = scalar_select %p138, %s139, %s140
      %p144 = pneg %p138
      %p145 = scmp.eq.s32.totalorder %s13, 1
      %p146 = por %p144, %p145
      %p147 = scmp.ne.s32.totalorder %s139, %s142
      %p148 = scmp.eq.s32.totalorder %s13, 0
      %p149 = por %p147, %p148
      %p150 = scmp.ne.s32.totalorder %s139, %s142
      %p151 = scmp.eq.s32.totalorder %s18, 1
      %p152 = por %p150, %p151
      %p153 = scmp.ne.s32.totalorder %s142, %s143
      %p154 = scmp.eq.s32.totalorder %s18, 0
      %p155 = por %p153, %p154
      %p156 = scmp.ne.s32.totalorder %s142, %s143
      %p157 = scmp.eq.s32.totalorder %s19, 1
      %p158 = por %p156, %p157
      %p160 = scmp.ne.s32.totalorder %s143, %s159
      %p161 = scmp.eq.s32.totalorder %s19, 0
      %p162 = por %p160, %p161
      %p163 = scmp.le.s32.totalorder 1, %s13
      %p164 = scmp.lt.s32.totalorder %s13, 3
      %p165 = pnand %p163, %p164
      %p166 = pneg %p165
      // Predicated region
      $region9: #{tpu_custom_call.1} parent=5 // pred_check
        _
      $region10: #{tpu_custom_call.1} parent=5 // pred_check_branch
        %168 = sbr.rel (%p165) target = $region12
      $region11: #{tpu_custom_call.1} parent=5 // pred_region
        %s169 = ssub.s32 %s13, 1
        // Predicated region
        $region13: #{tpu_custom_call.1} parent=11 // pred_check
          %p170 = pneg %p106
        $region14: #{tpu_custom_call.1} parent=11 // pred_check_branch
          %172 = sbr.rel (%p170) target = $region16
        $region15: #{tpu_custom_call.1} parent=11 // pred_region
          _
        $region16: #{tpu_custom_call.1} parent=11 // pred_fallthru
          _
        // Predicated region
        $region17: #{tpu_custom_call.1} parent=11 // pred_check
          %p173 = pneg %p127
        $region18: #{tpu_custom_call.1} parent=11 // pred_check_branch
          %175 = sbr.rel (%p173) target = $region20
        $region19: #{tpu_custom_call.1} parent=11 // pred_region
          _
        $region20: #{tpu_custom_call.1} parent=11 // pred_fallthru
          _
      $region12: #{tpu_custom_call.1} parent=5 // pred_fallthru
        _
      %p176 = scmp.lt.s32.totalorder %s13, 2
      // Predicated region
      $region21: #{tpu_custom_call.1} parent=5 // pred_check
        %p177 = pneg %p176
      $region22: #{tpu_custom_call.1} parent=5 // pred_check_branch
        %179 = sbr.rel (%p177) target = $region24
      $region23: #{tpu_custom_call.1} parent=5 // pred_region
        // Predicated region
        $region25: #{tpu_custom_call.1} parent=23 // pred_check
          %p180 = pneg %p47
        $region26: #{tpu_custom_call.1} parent=23 // pred_check_branch
          %182 = sbr.rel (%p180) target = $region28
        $region27: #{tpu_custom_call.1} parent=23 // pred_region
          %s183 = smul.u32 3, %s21
          %p184 = scmp.lt.s32.totalorder %s20, 1
          %s185 = scalar_select %p184, %s20, 1
          %p186 = scmp.lt.s32.totalorder %s183, 5
          %s187 = scalar_select %p186, %s183, 5
          %s188 = smul.addr %s185, 6
          %s189 = sadd.s32 %s187, %s188
          %s190 = smul.addr %s189, 4
          %s191 = scalar_lea.vmem %s0, %s190
          %s192 = smul.u32 3, %s21
        $region28: #{tpu_custom_call.1} parent=23 // pred_fallthru
          _
        // Predicated region
        $region29: #{tpu_custom_call.1} parent=23 // pred_check
          %p193 = pneg %p79
        $region30: #{tpu_custom_call.1} parent=23 // pred_check_branch
          %195 = sbr.rel (%p193) target = $region32
        $region31: #{tpu_custom_call.1} parent=23 // pred_region
          %s196 = sadd.s32 %s21, 1
          %s197 = smul.u32 %s196, 3
          %p198 = scmp.lt.s32.totalorder %s20, 1
          %s199 = scalar_select %p198, %s20, 1
          %p200 = scmp.lt.s32.totalorder %s197, 5
          %s201 = scalar_select %p200, %s197, 5
          %s202 = smul.addr %s199, 6
          %s203 = sadd.s32 %s201, %s202
          %s204 = smul.addr %s203, 4
          %s205 = scalar_lea.vmem %s1, %s204
          %s206 = sadd.s32 %s21, 1
          %s207 = smul.u32 %s206, 3
        $region32: #{tpu_custom_call.1} parent=23 // pred_fallthru
          _
      $region24: #{tpu_custom_call.1} parent=5 // pred_fallthru
        _
      %p208 = scmp.le.s32.totalorder 1, %s13
      %p209 = scmp.lt.s32.totalorder %s13, 3
      %p210 = pnand %p208, %p209
      %p211 = pneg %p210
      // Predicated region
      $region33: #{tpu_custom_call.1} parent=5 // pred_check
        _
      $region34: #{tpu_custom_call.1} parent=5 // pred_check_branch
        %213 = sbr.rel (%p210) target = $region36
      $region35: #{tpu_custom_call.1} parent=5 // pred_region
        %s214 = ssub.s32 %s13, 1
        %s215 = smul.u32 3, %s23
        %p216 = scmp.lt.s32.totalorder %s22, 1
        %s217 = scalar_select %p216, %s22, 1
        %p218 = scmp.lt.s32.totalorder %s215, 5
        %s219 = scalar_select %p218, %s215, 5
        %s220 = smul.addr %s217, 6
        %s221 = sadd.s32 %s219, %s220
        %s222 = smul.addr %s221, 4
        %s223 = scalar_lea.vmem %s0, %s222
        %p224 = pneg %p53
        %p225 = pneg %p50
        %s226 = sadd.s32 %s23, 1
        %s227 = smul.u32 %s226, 3
        %p228 = scmp.lt.s32.totalorder %s22, 1
        %s229 = scalar_select %p228, %s22, 1
        %p230 = scmp.lt.s32.totalorder %s227, 5
        %s231 = scalar_select %p230, %s227, 5
        %s232 = smul.addr %s229, 6
        %s233 = sadd.s32 %s231, %s232
        %s234 = smul.addr %s233, 4
        %s235 = scalar_lea.vmem %s1, %s234
        %p236 = pneg %p85
        %p237 = pneg %p82
        %p238 = pneg %p106
        %p239 = pneg %p103
        %p240 = pneg %p127
        %p241 = pneg %p124
        %p242 = pneg %p155
        %p243 = pneg %p152
        %s244 = sand.u32 %s142, 1
        %s245 = scalar_lea.sflag [#allocation3], %s244
        %s246 = sand.u32 %s142, 1
        %s247 = smul.addr %s246, 24
        %s248 = scalar_lea.vmem [#allocation2], %s247
        %s249 = smul.u32 3, %s23
        %p250 = scmp.lt.s32.totalorder %s22, 1
        %s251 = scalar_select %p250, %s22, 1
        %p252 = scmp.lt.s32.totalorder %s249, 5
        %s253 = scalar_select %p252, %s249, 5
        %s254 = smul.addr %s251, 6
        %s255 = sadd.s32 %s253, %s254
        %s256 = smul.addr %s255, 4
        %s257 = scalar_lea.vmem %s0, %s256
        %s258 = smul.u32 3, %s23
        %s259 = sadd.s32 %s23, 1
        %s260 = smul.u32 %s259, 3
        %p261 = scmp.lt.s32.totalorder %s22, 1
        %s262 = scalar_select %p261, %s22, 1
        %p263 = scmp.lt.s32.totalorder %s260, 5
        %s264 = scalar_select %p263, %s260, 5
        %s265 = smul.addr %s262, 6
        %s266 = sadd.s32 %s264, %s265
        %s267 = smul.addr %s266, 4
        %s268 = scalar_lea.vmem %s1, %s267
        %s269 = sadd.s32 %s23, 1
        %s270 = smul.u32 %s269, 3
        %s271 = smul.u32 3, %s23
        %v272 = vld [vmem:[%s257] sm:$0xff]
        %v273 = vld [vmem:[%s257 + $0x8] sm:$0xf]
        %v274 = vld [vmem:[%s268] sm:$0xf]
        %v277 = vcombine.high %v272, %v272
        %v278 = vld [vmem:[%s2] sm:$0xff]
        %s279 = scalar_lea.vmem %s2, 8
        %v280 = vld [vmem:[%s279] sm:$0xff]
        %282 = vrot.lane.b32.xlu0 %v272, 127
        %v283 = vpop.permute.xlu0 %282
        %284 = vrot.lane.b32.xlu0 %v277, 127
        %v285 = vpop.permute.xlu0 %284
        %286 = vrot.lane.b32.xlu0 %v273, 127
        %v287 = vpop.permute.xlu0 %286
        %288 = vrot.lane.b32.xlu0 %v274, 127
        %v289 = vpop.permute.xlu0 %288
        %vm290 = vcmask 1039360
        %v291 = vsel %vm290, %v283, %v285
        %v292 = vsel %vm290, %v285, %v287
        %v293 = vsel %vm290, %v287, %v289
        %vm294 = vcmask 31744
        %v296 = vsel %vm294, %v280, 0
        %vm298 = vcmask 1043456
        %v299 = vsel %vm298, %v291, 0
        %v301 = vsel %vm298, %v292, 0
        %v303 = vsel %vm298, %v293, 0
        %305 = vmatprep.subr.mxu0 0.0
        %306 = vmatpush1.msra.mxu0 0.0
        %307 = vmatprep.subr.mxu0 0.0
        %308 = vmatpush1.msra.mxu0 0.0
        %309 = vmatprep.subr.mxu0 0.0
        %310 = vmatpush1.msra.mxu0 0.0
        %311 = vmatprep.subr.mxu0 0.0
        %312 = vmatpush1.msra.mxu0 0.0
        %313 = vmatprep.subr.mxu0 0.0
        %314 = vmatpush1.msra.mxu0 0.0
        %315 = vmatprep.subr.mxu0 0.0
        %316 = vmatpush1.msra.mxu0 0.0
        %317 = vmatprep.subr.mxu0 0.0
        %318 = vmatpush1.msra.mxu0 0.0
        %319 = vmatprep.subr.mxu0 0.0
        %320 = vmatpush1.msra.mxu0 0.0
        %321 = vmatprep.subr.mxu0 0.0
        %322 = vmatpush1.msra.mxu0 0.0
        %323 = vmatprep.subr.mxu0 0.0
        %324 = vmatpush1.msra.mxu0 0.0
        %325 = vmatprep.subr.mxu0 0.0
        %326 = vmatpush1.msra.mxu0 0.0
        %327 = vmatprep.subr.mxu0 0.0
        %328 = vmatpush1.msra.mxu0 0.0
        %329 = vmatprep.subr.mxu0 0.0
        %330 = vmatpush1.msra.mxu0 0.0
        %331 = vmatprep.subr.mxu0 0.0
        %332 = vmatpush1.msra.mxu0 0.0
        %333 = vmatprep.subr.mxu0 0.0
        %334 = vmatpush1.msra.mxu0 0.0
        %335 = vmatprep.subr.mxu0 %v301
        %336 = vmatpush1.msra.mxu0 %v299
        %337 = vmatprep.subr.mxu0 0.0
        %338 = vmatpush2.msra.mxu0 0.0
        %339 = vmatprep.subr.mxu0 0.0
        %340 = vmatpush2.msra.mxu0 0.0
        %341 = vmatprep.subr.mxu0 0.0
        %342 = vmatpush2.msra.mxu0 0.0
        %343 = vmatprep.subr.mxu0 0.0
        %344 = vmatpush2.msra.mxu0 0.0
        %345 = vmatprep.subr.mxu0 0.0
        %346 = vmatpush2.msra.mxu0 0.0
        %347 = vmatprep.subr.mxu0 0.0
        %348 = vmatpush2.msra.mxu0 0.0
        %349 = vmatprep.subr.mxu0 0.0
        %350 = vmatpush2.msra.mxu0 0.0
        %351 = vmatprep.subr.mxu0 0.0
        %352 = vmatpush2.msra.mxu0 0.0
        %353 = vmatprep.subr.mxu0 0.0
        %354 = vmatpush2.msra.mxu0 0.0
        %355 = vmatprep.subr.mxu0 0.0
        %356 = vmatpush2.msra.mxu0 0.0
        %357 = vmatprep.subr.mxu0 0.0
        %358 = vmatpush2.msra.mxu0 0.0
        %359 = vmatprep.subr.mxu0 0.0
        %360 = vmatpush2.msra.mxu0 0.0
        %361 = vmatprep.subr.mxu0 0.0
        %362 = vmatpush2.msra.mxu0 0.0
        %363 = vmatprep.subr.mxu0 0.0
        %364 = vmatpush2.msra.mxu0 0.0
        %365 = vmatprep.subr.mxu0 0.0
        %366 = vmatpush2.msra.mxu0 0.0
        %367 = vmatprep.subr.mxu0 0.0
        %368 = vmatpush2.msra.mxu0 0.0
        %369 = vmatprep.mubr.f32.mxu0 0.0
        %370 = vmatmul.mubr.f32.gmra.mxu0 %v296
        %v371 = vpop.f32.mrf.mxu0
        %v372 = vadd.f32 0.0, %v371
        %v373 = vpop.f32.mrf.mxu0
        %v374 = vadd.f32 0.0, %v373
        %375 = vdwg.mxu0
        %376 = vmatprep.subr.mxu0 0.0
        %377 = vmatpush1.msra.mxu0 0.0
        %378 = vmatprep.subr.mxu0 0.0
        %379 = vmatpush1.msra.mxu0 0.0
        %380 = vmatprep.subr.mxu0 0.0
        %381 = vmatpush1.msra.mxu0 0.0
        %382 = vmatprep.subr.mxu0 0.0
        %383 = vmatpush1.msra.mxu0 0.0
        %384 = vmatprep.subr.mxu0 0.0
        %385 = vmatpush1.msra.mxu0 0.0
        %386 = vmatprep.subr.mxu0 0.0
        %387 = vmatpush1.msra.mxu0 0.0
        %388 = vmatprep.subr.mxu0 0.0
        %389 = vmatpush1.msra.mxu0 0.0
        %390 = vmatprep.subr.mxu0 0.0
        %391 = vmatpush1.msra.mxu0 0.0
        %392 = vmatprep.subr.mxu0 0.0
        %393 = vmatpush1.msra.mxu0 0.0
        %394 = vmatprep.subr.mxu0 0.0
        %395 = vmatpush1.msra.mxu0 0.0
        %396 = vmatprep.subr.mxu0 0.0
        %397 = vmatpush1.msra.mxu0 0.0
        %398 = vmatprep.subr.mxu0 0.0
        %399 = vmatpush1.msra.mxu0 0.0
        %400 = vmatprep.subr.mxu0 0.0
        %401 = vmatpush1.msra.mxu0 0.0
        %402 = vmatprep.subr.mxu0 0.0
        %403 = vmatpush1.msra.mxu0 0.0
        %404 = vmatprep.subr.mxu0 0.0
        %405 = vmatpush1.msra.mxu0 0.0
        %406 = vmatprep.subr.mxu0 0.0
        %407 = vmatpush1.msra.mxu0 %v303
        %408 = vmatprep.subr.mxu0 0.0
        %409 = vmatpush2.msra.mxu0 0.0
        %410 = vmatprep.subr.mxu0 0.0
        %411 = vmatpush2.msra.mxu0 0.0
        %412 = vmatprep.subr.mxu0 0.0
        %413 = vmatpush2.msra.mxu0 0.0
        %414 = vmatprep.subr.mxu0 0.0
        %415 = vmatpush2.msra.mxu0 0.0
        %416 = vmatprep.subr.mxu0 0.0
        %417 = vmatpush2.msra.mxu0 0.0
        %418 = vmatprep.subr.mxu0 0.0
        %419 = vmatpush2.msra.mxu0 0.0
        %420 = vmatprep.subr.mxu0 0.0
        %421 = vmatpush2.msra.mxu0 0.0
        %422 = vmatprep.subr.mxu0 0.0
        %423 = vmatpush2.msra.mxu0 0.0
        %424 = vmatprep.subr.mxu0 0.0
        %425 = vmatpush2.msra.mxu0 0.0
        %426 = vmatprep.subr.mxu0 0.0
        %427 = vmatpush2.msra.mxu0 0.0
        %428 = vmatprep.subr.mxu0 0.0
        %429 = vmatpush2.msra.mxu0 0.0
        %430 = vmatprep.subr.mxu0 0.0
        %431 = vmatpush2.msra.mxu0 0.0
        %432 = vmatprep.subr.mxu0 0.0
        %433 = vmatpush2.msra.mxu0 0.0
        %434 = vmatprep.subr.mxu0 0.0
        %435 = vmatpush2.msra.mxu0 0.0
        %436 = vmatprep.subr.mxu0 0.0
        %437 = vmatpush2.msra.mxu0 0.0
        %438 = vmatprep.subr.mxu0 0.0
        %439 = vmatpush2.msra.mxu0 0.0
        %440 = vmatprep.mubr.f32.mxu0 0.0
        %441 = vmatmul.mubr.f32.gmra.mxu0 %v296
        %v442 = vpop.f32.mrf.mxu0
        %v443 = vadd.f32 0.0, %v442
        %v444 = vpop.f32.mrf.mxu0
        %445 = vdwg.mxu0
        %v447 = vsel %vm294, %v278, 0
        %v449 = vsel %vm298, %v272, 0
        %v451 = vsel %vm298, %v277, 0
        %v453 = vsel %vm298, %v273, 0
        %455 = vmatprep.subr.mxu0 0.0
        %456 = vmatpush1.msra.mxu0 0.0
        %457 = vmatprep.subr.mxu0 0.0
        %458 = vmatpush1.msra.mxu0 0.0
        %459 = vmatprep.subr.mxu0 0.0
        %460 = vmatpush1.msra.mxu0 0.0
        %461 = vmatprep.subr.mxu0 0.0
        %462 = vmatpush1.msra.mxu0 0.0
        %463 = vmatprep.subr.mxu0 0.0
        %464 = vmatpush1.msra.mxu0 0.0
        %465 = vmatprep.subr.mxu0 0.0
        %466 = vmatpush1.msra.mxu0 0.0
        %467 = vmatprep.subr.mxu0 0.0
        %468 = vmatpush1.msra.mxu0 0.0
        %469 = vmatprep.subr.mxu0 0.0
        %470 = vmatpush1.msra.mxu0 0.0
        %471 = vmatprep.subr.mxu0 0.0
        %472 = vmatpush1.msra.mxu0 0.0
        %473 = vmatprep.subr.mxu0 0.0
        %474 = vmatpush1.msra.mxu0 0.0
        %475 = vmatprep.subr.mxu0 0.0
        %476 = vmatpush1.msra.mxu0 0.0
        %477 = vmatprep.subr.mxu0 0.0
        %478 = vmatpush1.msra.mxu0 0.0
        %479 = vmatprep.subr.mxu0 0.0
        %480 = vmatpush1.msra.mxu0 0.0
        %481 = vmatprep.subr.mxu0 0.0
        %482 = vmatpush1.msra.mxu0 0.0
        %483 = vmatprep.subr.mxu0 0.0
        %484 = vmatpush1.msra.mxu0 0.0
        %485 = vmatprep.subr.mxu0 %v451
        %486 = vmatpush1.msra.mxu0 %v449
        %487 = vmatprep.subr.mxu0 0.0
        %488 = vmatpush2.msra.mxu0 0.0
        %489 = vmatprep.subr.mxu0 0.0
        %490 = vmatpush2.msra.mxu0 0.0
        %491 = vmatprep.subr.mxu0 0.0
        %492 = vmatpush2.msra.mxu0 0.0
        %493 = vmatprep.subr.mxu0 0.0
        %494 = vmatpush2.msra.mxu0 0.0
        %495 = vmatprep.subr.mxu0 0.0
        %496 = vmatpush2.msra.mxu0 0.0
        %497 = vmatprep.subr.mxu0 0.0
        %498 = vmatpush2.msra.mxu0 0.0
        %499 = vmatprep.subr.mxu0 0.0
        %500 = vmatpush2.msra.mxu0 0.0
        %501 = vmatprep.subr.mxu0 0.0
        %502 = vmatpush2.msra.mxu0 0.0
        %503 = vmatprep.subr.mxu0 0.0
        %504 = vmatpush2.msra.mxu0 0.0
        %505 = vmatprep.subr.mxu0 0.0
        %506 = vmatpush2.msra.mxu0 0.0
        %507 = vmatprep.subr.mxu0 0.0
        %508 = vmatpush2.msra.mxu0 0.0
        %509 = vmatprep.subr.mxu0 0.0
        %510 = vmatpush2.msra.mxu0 0.0
        %511 = vmatprep.subr.mxu0 0.0
        %512 = vmatpush2.msra.mxu0 0.0
        %513 = vmatprep.subr.mxu0 0.0
        %514 = vmatpush2.msra.mxu0 0.0
        %515 = vmatprep.subr.mxu0 0.0
        %516 = vmatpush2.msra.mxu0 0.0
        %517 = vmatprep.subr.mxu0 0.0
        %518 = vmatpush2.msra.mxu0 0.0
        %519 = vmatprep.mubr.f32.mxu0 0.0
        %520 = vmatmul.mubr.f32.gmra.mxu0 %v447
        %v521 = vpop.f32.mrf.mxu0
        %v522 = vadd.f32 %v372, %v521
        %v523 = vpop.f32.mrf.mxu0
        %v524 = vadd.f32 %v374, %v523
        %525 = vdwg.mxu0
        %526 = vmatprep.subr.mxu0 0.0
        %527 = vmatpush1.msra.mxu0 0.0
        %528 = vmatprep.subr.mxu0 0.0
        %529 = vmatpush1.msra.mxu0 0.0
        %530 = vmatprep.subr.mxu0 0.0
        %531 = vmatpush1.msra.mxu0 0.0
        %532 = vmatprep.subr.mxu0 0.0
        %533 = vmatpush1.msra.mxu0 0.0
        %534 = vmatprep.subr.mxu0 0.0
        %535 = vmatpush1.msra.mxu0 0.0
        %536 = vmatprep.subr.mxu0 0.0
        %537 = vmatpush1.msra.mxu0 0.0
        %538 = vmatprep.subr.mxu0 0.0
        %539 = vmatpush1.msra.mxu0 0.0
        %540 = vmatprep.subr.mxu0 0.0
        %541 = vmatpush1.msra.mxu0 0.0
        %542 = vmatprep.subr.mxu0 0.0
        %543 = vmatpush1.msra.mxu0 0.0
        %544 = vmatprep.subr.mxu0 0.0
        %545 = vmatpush1.msra.mxu0 0.0
        %546 = vmatprep.subr.mxu0 0.0
        %547 = vmatpush1.msra.mxu0 0.0
        %548 = vmatprep.subr.mxu0 0.0
        %549 = vmatpush1.msra.mxu0 0.0
        %550 = vmatprep.subr.mxu0 0.0
        %551 = vmatpush1.msra.mxu0 0.0
        %552 = vmatprep.subr.mxu0 0.0
        %553 = vmatpush1.msra.mxu0 0.0
        %554 = vmatprep.subr.mxu0 0.0
        %555 = vmatpush1.msra.mxu0 0.0
        %556 = vmatprep.subr.mxu0 0.0
        %557 = vmatpush1.msra.mxu0 %v453
        %558 = vmatprep.subr.mxu0 0.0
        %559 = vmatpush2.msra.mxu0 0.0
        %560 = vmatprep.subr.mxu0 0.0
        %561 = vmatpush2.msra.mxu0 0.0
        %562 = vmatprep.subr.mxu0 0.0
        %563 = vmatpush2.msra.mxu0 0.0
        %564 = vmatprep.subr.mxu0 0.0
        %565 = vmatpush2.msra.mxu0 0.0
        %566 = vmatprep.subr.mxu0 0.0
        %567 = vmatpush2.msra.mxu0 0.0
        %568 = vmatprep.subr.mxu0 0.0
        %569 = vmatpush2.msra.mxu0 0.0
        %570 = vmatprep.subr.mxu0 0.0
        %571 = vmatpush2.msra.mxu0 0.0
        %572 = vmatprep.subr.mxu0 0.0
        %573 = vmatpush2.msra.mxu0 0.0
        %574 = vmatprep.subr.mxu0 0.0
        %575 = vmatpush2.msra.mxu0 0.0
        %576 = vmatprep.subr.mxu0 0.0
        %577 = vmatpush2.msra.mxu0 0.0
        %578 = vmatprep.subr.mxu0 0.0
        %579 = vmatpush2.msra.mxu0 0.0
        %580 = vmatprep.subr.mxu0 0.0
        %581 = vmatpush2.msra.mxu0 0.0
        %582 = vmatprep.subr.mxu0 0.0
        %583 = vmatpush2.msra.mxu0 0.0
        %584 = vmatprep.subr.mxu0 0.0
        %585 = vmatpush2.msra.mxu0 0.0
        %586 = vmatprep.subr.mxu0 0.0
        %587 = vmatpush2.msra.mxu0 0.0
        %588 = vmatprep.subr.mxu0 0.0
        %589 = vmatpush2.msra.mxu0 0.0
        %590 = vmatprep.mubr.f32.mxu0 0.0
        %591 = vmatmul.mubr.f32.gmra.mxu0 %v447
        %v592 = vpop.f32.mrf.mxu0
        %v593 = vadd.f32 %v443, %v592
        %v594 = vpop.f32.mrf.mxu0
        %595 = vdwg.mxu0
        %s596 = scalar_lea.vmem %s2, 16
        %v597 = vld [vmem:[%s596] sm:$0xff]
        %598 = vrot.lane.b32.xlu0 %v272, 126
        %v599 = vpop.permute.xlu0 %598
        %600 = vrot.lane.b32.xlu0 %v277, 126
        %v601 = vpop.permute.xlu0 %600
        %602 = vrot.lane.b32.xlu0 %v273, 126
        %v603 = vpop.permute.xlu0 %602
        %604 = vrot.lane.b32.xlu0 %v274, 126
        %v605 = vpop.permute.xlu0 %604
        %vm606 = vcmask 1031168
        %v607 = vsel %vm606, %v599, %v601
        %v608 = vsel %vm606, %v601, %v603
        %v609 = vsel %vm606, %v603, %v605
        %v611 = vsel %vm294, %v597, 0
        %v613 = vsel %vm298, %v607, 0
        %v615 = vsel %vm298, %v608, 0
        %v617 = vsel %vm298, %v609, 0
        %619 = vmatprep.subr.mxu0 0.0
        %620 = vmatpush1.msra.mxu0 0.0
        %621 = vmatprep.subr.mxu0 0.0
        %622 = vmatpush1.msra.mxu0 0.0
        %623 = vmatprep.subr.mxu0 0.0
        %624 = vmatpush1.msra.mxu0 0.0
        %625 = vmatprep.subr.mxu0 0.0
        %626 = vmatpush1.msra.mxu0 0.0
        %627 = vmatprep.subr.mxu0 0.0
        %628 = vmatpush1.msra.mxu0 0.0
        %629 = vmatprep.subr.mxu0 0.0
        %630 = vmatpush1.msra.mxu0 0.0
        %631 = vmatprep.subr.mxu0 0.0
        %632 = vmatpush1.msra.mxu0 0.0
        %633 = vmatprep.subr.mxu0 0.0
        %634 = vmatpush1.msra.mxu0 0.0
        %635 = vmatprep.subr.mxu0 0.0
        %636 = vmatpush1.msra.mxu0 0.0
        %637 = vmatprep.subr.mxu0 0.0
        %638 = vmatpush1.msra.mxu0 0.0
        %639 = vmatprep.subr.mxu0 0.0
        %640 = vmatpush1.msra.mxu0 0.0
        %641 = vmatprep.subr.mxu0 0.0
        %642 = vmatpush1.msra.mxu0 0.0
        %643 = vmatprep.subr.mxu0 0.0
        %644 = vmatpush1.msra.mxu0 0.0
        %645 = vmatprep.subr.mxu0 0.0
        %646 = vmatpush1.msra.mxu0 0.0
        %647 = vmatprep.subr.mxu0 0.0
        %648 = vmatpush1.msra.mxu0 0.0
        %649 = vmatprep.subr.mxu0 %v615
        %650 = vmatpush1.msra.mxu0 %v613
        %651 = vmatprep.subr.mxu0 0.0
        %652 = vmatpush2.msra.mxu0 0.0
        %653 = vmatprep.subr.mxu0 0.0
        %654 = vmatpush2.msra.mxu0 0.0
        %655 = vmatprep.subr.mxu0 0.0
        %656 = vmatpush2.msra.mxu0 0.0
        %657 = vmatprep.subr.mxu0 0.0
        %658 = vmatpush2.msra.mxu0 0.0
        %659 = vmatprep.subr.mxu0 0.0
        %660 = vmatpush2.msra.mxu0 0.0
        %661 = vmatprep.subr.mxu0 0.0
        %662 = vmatpush2.msra.mxu0 0.0
        %663 = vmatprep.subr.mxu0 0.0
        %664 = vmatpush2.msra.mxu0 0.0
        %665 = vmatprep.subr.mxu0 0.0
        %666 = vmatpush2.msra.mxu0 0.0
        %667 = vmatprep.subr.mxu0 0.0
        %668 = vmatpush2.msra.mxu0 0.0
        %669 = vmatprep.subr.mxu0 0.0
        %670 = vmatpush2.msra.mxu0 0.0
        %671 = vmatprep.subr.mxu0 0.0
        %672 = vmatpush2.msra.mxu0 0.0
        %673 = vmatprep.subr.mxu0 0.0
        %674 = vmatpush2.msra.mxu0 0.0
        %675 = vmatprep.subr.mxu0 0.0
        %676 = vmatpush2.msra.mxu0 0.0
        %677 = vmatprep.subr.mxu0 0.0
        %678 = vmatpush2.msra.mxu0 0.0
        %679 = vmatprep.subr.mxu0 0.0
        %680 = vmatpush2.msra.mxu0 0.0
        %681 = vmatprep.subr.mxu0 0.0
        %682 = vmatpush2.msra.mxu0 0.0
        %683 = vmatprep.mubr.f32.mxu0 0.0
        %684 = vmatmul.mubr.f32.gmra.mxu0 %v611
        %v685 = vpop.f32.mrf.mxu0
        %v686 = vadd.f32 0.0, %v685
        %v687 = vpop.f32.mrf.mxu0
        %v688 = vadd.f32 0.0, %v687
        %689 = vdwg.mxu0
        %690 = vmatprep.subr.mxu0 0.0
        %691 = vmatpush1.msra.mxu0 0.0
        %692 = vmatprep.subr.mxu0 0.0
        %693 = vmatpush1.msra.mxu0 0.0
        %694 = vmatprep.subr.mxu0 0.0
        %695 = vmatpush1.msra.mxu0 0.0
        %696 = vmatprep.subr.mxu0 0.0
        %697 = vmatpush1.msra.mxu0 0.0
        %698 = vmatprep.subr.mxu0 0.0
        %699 = vmatpush1.msra.mxu0 0.0
        %700 = vmatprep.subr.mxu0 0.0
        %701 = vmatpush1.msra.mxu0 0.0
        %702 = vmatprep.subr.mxu0 0.0
        %703 = vmatpush1.msra.mxu0 0.0
        %704 = vmatprep.subr.mxu0 0.0
        %705 = vmatpush1.msra.mxu0 0.0
        %706 = vmatprep.subr.mxu0 0.0
        %707 = vmatpush1.msra.mxu0 0.0
        %708 = vmatprep.subr.mxu0 0.0
        %709 = vmatpush1.msra.mxu0 0.0
        %710 = vmatprep.subr.mxu0 0.0
        %711 = vmatpush1.msra.mxu0 0.0
        %712 = vmatprep.subr.mxu0 0.0
        %713 = vmatpush1.msra.mxu0 0.0
        %714 = vmatprep.subr.mxu0 0.0
        %715 = vmatpush1.msra.mxu0 0.0
        %716 = vmatprep.subr.mxu0 0.0
        %717 = vmatpush1.msra.mxu0 0.0
        %718 = vmatprep.subr.mxu0 0.0
        %719 = vmatpush1.msra.mxu0 0.0
        %720 = vmatprep.subr.mxu0 0.0
        %721 = vmatpush1.msra.mxu0 %v617
        %722 = vmatprep.subr.mxu0 0.0
        %723 = vmatpush2.msra.mxu0 0.0
        %724 = vmatprep.subr.mxu0 0.0
        %725 = vmatpush2.msra.mxu0 0.0
        %726 = vmatprep.subr.mxu0 0.0
        %727 = vmatpush2.msra.mxu0 0.0
        %728 = vmatprep.subr.mxu0 0.0
        %729 = vmatpush2.msra.mxu0 0.0
        %730 = vmatprep.subr.mxu0 0.0
        %731 = vmatpush2.msra.mxu0 0.0
        %732 = vmatprep.subr.mxu0 0.0
        %733 = vmatpush2.msra.mxu0 0.0
        %734 = vmatprep.subr.mxu0 0.0
        %735 = vmatpush2.msra.mxu0 0.0
        %736 = vmatprep.subr.mxu0 0.0
        %737 = vmatpush2.msra.mxu0 0.0
        %738 = vmatprep.subr.mxu0 0.0
        %739 = vmatpush2.msra.mxu0 0.0
        %740 = vmatprep.subr.mxu0 0.0
        %741 = vmatpush2.msra.mxu0 0.0
        %742 = vmatprep.subr.mxu0 0.0
        %743 = vmatpush2.msra.mxu0 0.0
        %744 = vmatprep.subr.mxu0 0.0
        %745 = vmatpush2.msra.mxu0 0.0
        %746 = vmatprep.subr.mxu0 0.0
        %747 = vmatpush2.msra.mxu0 0.0
        %748 = vmatprep.subr.mxu0 0.0
        %749 = vmatpush2.msra.mxu0 0.0
        %750 = vmatprep.subr.mxu0 0.0
        %751 = vmatpush2.msra.mxu0 0.0
        %752 = vmatprep.subr.mxu0 0.0
        %753 = vmatpush2.msra.mxu0 0.0
        %754 = vmatprep.mubr.f32.mxu0 0.0
        %755 = vmatmul.mubr.f32.gmra.mxu0 %v611
        %v756 = vpop.f32.mrf.mxu0
        %v757 = vadd.f32 0.0, %v756
        %v758 = vpop.f32.mrf.mxu0
        %759 = vdwg.mxu0
        %v760 = vadd.f32 %v522, %v686
        %v761 = vadd.f32 %v524, %v688
        %v762 = vadd.f32 %v593, %v757
        %s763 = scalar_lea.vmem %s2, 24
        %v764 = vld [vmem:[%s763] sm:$0xff]
        %765 = vrot.lane.b32.xlu0 %v272, 110
        %v766 = vpop.permute.xlu0 %765
        %767 = vrot.lane.b32.xlu0 %v277, 110
        %v768 = vpop.permute.xlu0 %767
        %769 = vrot.lane.b32.xlu0 %v273, 110
        %v770 = vpop.permute.xlu0 %769
        %771 = vrot.lane.b32.xlu0 %v274, 110
        %v772 = vpop.permute.xlu0 %771
        %vm773 = vcmask 900096
        %v774 = vsel %vm773, %v766, %v768
        %v775 = vsel %vm773, %v768, %v770
        %v776 = vsel %vm773, %v770, %v772
        %v778 = vsel %vm294, %v764, 0
        %v780 = vsel %vm298, %v774, 0
        %v782 = vsel %vm298, %v775, 0
        %v784 = vsel %vm298, %v776, 0
        %786 = vmatprep.subr.mxu0 0.0
        %787 = vmatpush1.msra.mxu0 0.0
        %788 = vmatprep.subr.mxu0 0.0
        %789 = vmatpush1.msra.mxu0 0.0
        %790 = vmatprep.subr.mxu0 0.0
        %791 = vmatpush1.msra.mxu0 0.0
        %792 = vmatprep.subr.mxu0 0.0
        %793 = vmatpush1.msra.mxu0 0.0
        %794 = vmatprep.subr.mxu0 0.0
        %795 = vmatpush1.msra.mxu0 0.0
        %796 = vmatprep.subr.mxu0 0.0
        %797 = vmatpush1.msra.mxu0 0.0
        %798 = vmatprep.subr.mxu0 0.0
        %799 = vmatpush1.msra.mxu0 0.0
        %800 = vmatprep.subr.mxu0 0.0
        %801 = vmatpush1.msra.mxu0 0.0
        %802 = vmatprep.subr.mxu0 0.0
        %803 = vmatpush1.msra.mxu0 0.0
        %804 = vmatprep.subr.mxu0 0.0
        %805 = vmatpush1.msra.mxu0 0.0
        %806 = vmatprep.subr.mxu0 0.0
        %807 = vmatpush1.msra.mxu0 0.0
        %808 = vmatprep.subr.mxu0 0.0
        %809 = vmatpush1.msra.mxu0 0.0
        %810 = vmatprep.subr.mxu0 0.0
        %811 = vmatpush1.msra.mxu0 0.0
        %812 = vmatprep.subr.mxu0 0.0
        %813 = vmatpush1.msra.mxu0 0.0
        %814 = vmatprep.subr.mxu0 0.0
        %815 = vmatpush1.msra.mxu0 0.0
        %816 = vmatprep.subr.mxu0 %v782
        %817 = vmatpush1.msra.mxu0 %v780
        %818 = vmatprep.subr.mxu0 0.0
        %819 = vmatpush2.msra.mxu0 0.0
        %820 = vmatprep.subr.mxu0 0.0
        %821 = vmatpush2.msra.mxu0 0.0
        %822 = vmatprep.subr.mxu0 0.0
        %823 = vmatpush2.msra.mxu0 0.0
        %824 = vmatprep.subr.mxu0 0.0
        %825 = vmatpush2.msra.mxu0 0.0
        %826 = vmatprep.subr.mxu0 0.0
        %827 = vmatpush2.msra.mxu0 0.0
        %828 = vmatprep.subr.mxu0 0.0
        %829 = vmatpush2.msra.mxu0 0.0
        %830 = vmatprep.subr.mxu0 0.0
        %831 = vmatpush2.msra.mxu0 0.0
        %832 = vmatprep.subr.mxu0 0.0
        %833 = vmatpush2.msra.mxu0 0.0
        %834 = vmatprep.subr.mxu0 0.0
        %835 = vmatpush2.msra.mxu0 0.0
        %836 = vmatprep.subr.mxu0 0.0
        %837 = vmatpush2.msra.mxu0 0.0
        %838 = vmatprep.subr.mxu0 0.0
        %839 = vmatpush2.msra.mxu0 0.0
        %840 = vmatprep.subr.mxu0 0.0
        %841 = vmatpush2.msra.mxu0 0.0
        %842 = vmatprep.subr.mxu0 0.0
        %843 = vmatpush2.msra.mxu0 0.0
        %844 = vmatprep.subr.mxu0 0.0
        %845 = vmatpush2.msra.mxu0 0.0
        %846 = vmatprep.subr.mxu0 0.0
        %847 = vmatpush2.msra.mxu0 0.0
        %848 = vmatprep.subr.mxu0 0.0
        %849 = vmatpush2.msra.mxu0 0.0
        %850 = vmatprep.mubr.f32.mxu0 0.0
        %851 = vmatmul.mubr.f32.gmra.mxu0 %v778
        %v852 = vpop.f32.mrf.mxu0
        %v853 = vadd.f32 0.0, %v852
        %v854 = vpop.f32.mrf.mxu0
        %v855 = vadd.f32 0.0, %v854
        %856 = vdwg.mxu0
        %857 = vmatprep.subr.mxu0 0.0
        %858 = vmatpush1.msra.mxu0 0.0
        %859 = vmatprep.subr.mxu0 0.0
        %860 = vmatpush1.msra.mxu0 0.0
        %861 = vmatprep.subr.mxu0 0.0
        %862 = vmatpush1.msra.mxu0 0.0
        %863 = vmatprep.subr.mxu0 0.0
        %864 = vmatpush1.msra.mxu0 0.0
        %865 = vmatprep.subr.mxu0 0.0
        %866 = vmatpush1.msra.mxu0 0.0
        %867 = vmatprep.subr.mxu0 0.0
        %868 = vmatpush1.msra.mxu0 0.0
        %869 = vmatprep.subr.mxu0 0.0
        %870 = vmatpush1.msra.mxu0 0.0
        %871 = vmatprep.subr.mxu0 0.0
        %872 = vmatpush1.msra.mxu0 0.0
        %873 = vmatprep.subr.mxu0 0.0
        %874 = vmatpush1.msra.mxu0 0.0
        %875 = vmatprep.subr.mxu0 0.0
        %876 = vmatpush1.msra.mxu0 0.0
        %877 = vmatprep.subr.mxu0 0.0
        %878 = vmatpush1.msra.mxu0 0.0
        %879 = vmatprep.subr.mxu0 0.0
        %880 = vmatpush1.msra.mxu0 0.0
        %881 = vmatprep.subr.mxu0 0.0
        %882 = vmatpush1.msra.mxu0 0.0
        %883 = vmatprep.subr.mxu0 0.0
        %884 = vmatpush1.msra.mxu0 0.0
        %885 = vmatprep.subr.mxu0 0.0
        %886 = vmatpush1.msra.mxu0 0.0
        %887 = vmatprep.subr.mxu0 0.0
        %888 = vmatpush1.msra.mxu0 %v784
        %889 = vmatprep.subr.mxu0 0.0
        %890 = vmatpush2.msra.mxu0 0.0
        %891 = vmatprep.subr.mxu0 0.0
        %892 = vmatpush2.msra.mxu0 0.0
        %893 = vmatprep.subr.mxu0 0.0
        %894 = vmatpush2.msra.mxu0 0.0
        %895 = vmatprep.subr.mxu0 0.0
        %896 = vmatpush2.msra.mxu0 0.0
        %897 = vmatprep.subr.mxu0 0.0
        %898 = vmatpush2.msra.mxu0 0.0
        %899 = vmatprep.subr.mxu0 0.0
        %900 = vmatpush2.msra.mxu0 0.0
        %901 = vmatprep.subr.mxu0 0.0
        %902 = vmatpush2.msra.mxu0 0.0
        %903 = vmatprep.subr.mxu0 0.0
        %904 = vmatpush2.msra.mxu0 0.0
        %905 = vmatprep.subr.mxu0 0.0
        %906 = vmatpush2.msra.mxu0 0.0
        %907 = vmatprep.subr.mxu0 0.0
        %908 = vmatpush2.msra.mxu0 0.0
        %909 = vmatprep.subr.mxu0 0.0
        %910 = vmatpush2.msra.mxu0 0.0
        %911 = vmatprep.subr.mxu0 0.0
        %912 = vmatpush2.msra.mxu0 0.0
        %913 = vmatprep.subr.mxu0 0.0
        %914 = vmatpush2.msra.mxu0 0.0
        %915 = vmatprep.subr.mxu0 0.0
        %916 = vmatpush2.msra.mxu0 0.0
        %917 = vmatprep.subr.mxu0 0.0
        %918 = vmatpush2.msra.mxu0 0.0
        %919 = vmatprep.subr.mxu0 0.0
        %920 = vmatpush2.msra.mxu0 0.0
        %921 = vmatprep.mubr.f32.mxu0 0.0
        %922 = vmatmul.mubr.f32.gmra.mxu0 %v778
        %v923 = vpop.f32.mrf.mxu0
        %v924 = vadd.f32 0.0, %v923
        %v925 = vpop.f32.mrf.mxu0
        %926 = vdwg.mxu0
        %v927 = vadd.f32 %v760, %v853
        %v928 = vadd.f32 %v761, %v855
        %v929 = vadd.f32 %v762, %v924
        %s930 = scalar_lea.vmem %s2, 32
        %v931 = vld [vmem:[%s930] sm:$0xff]
        %932 = vrot.lane.b32.xlu0 %v272, 109
        %v933 = vpop.permute.xlu0 %932
        %934 = vrot.lane.b32.xlu0 %v277, 109
        %v935 = vpop.permute.xlu0 %934
        %936 = vrot.lane.b32.xlu0 %v273, 109
        %v937 = vpop.permute.xlu0 %936
        %938 = vrot.lane.b32.xlu0 %v274, 109
        %v939 = vpop.permute.xlu0 %938
        %vm940 = vcmask 891904
        %v941 = vsel %vm940, %v933, %v935
        %v942 = vsel %vm940, %v935, %v937
        %v943 = vsel %vm940, %v937, %v939
        %v945 = vsel %vm294, %v931, 0
        %v947 = vsel %vm298, %v941, 0
        %v949 = vsel %vm298, %v942, 0
        %v951 = vsel %vm298, %v943, 0
        %953 = vmatprep.subr.mxu0 0.0
        %954 = vmatpush1.msra.mxu0 0.0
        %955 = vmatprep.subr.mxu0 0.0
        %956 = vmatpush1.msra.mxu0 0.0
        %957 = vmatprep.subr.mxu0 0.0
        %958 = vmatpush1.msra.mxu0 0.0
        %959 = vmatprep.subr.mxu0 0.0
        %960 = vmatpush1.msra.mxu0 0.0
        %961 = vmatprep.subr.mxu0 0.0
        %962 = vmatpush1.msra.mxu0 0.0
        %963 = vmatprep.subr.mxu0 0.0
        %964 = vmatpush1.msra.mxu0 0.0
        %965 = vmatprep.subr.mxu0 0.0
        %966 = vmatpush1.msra.mxu0 0.0
        %967 = vmatprep.subr.mxu0 0.0
        %968 = vmatpush1.msra.mxu0 0.0
        %969 = vmatprep.subr.mxu0 0.0
        %970 = vmatpush1.msra.mxu0 0.0
        %971 = vmatprep.subr.mxu0 0.0
        %972 = vmatpush1.msra.mxu0 0.0
        %973 = vmatprep.subr.mxu0 0.0
        %974 = vmatpush1.msra.mxu0 0.0
        %975 = vmatprep.subr.mxu0 0.0
        %976 = vmatpush1.msra.mxu0 0.0
        %977 = vmatprep.subr.mxu0 0.0
        %978 = vmatpush1.msra.mxu0 0.0
        %979 = vmatprep.subr.mxu0 0.0
        %980 = vmatpush1.msra.mxu0 0.0
        %981 = vmatprep.subr.mxu0 0.0
        %982 = vmatpush1.msra.mxu0 0.0
        %983 = vmatprep.subr.mxu0 %v949
        %984 = vmatpush1.msra.mxu0 %v947
        %985 = vmatprep.subr.mxu0 0.0
        %986 = vmatpush2.msra.mxu0 0.0
        %987 = vmatprep.subr.mxu0 0.0
        %988 = vmatpush2.msra.mxu0 0.0
        %989 = vmatprep.subr.mxu0 0.0
        %990 = vmatpush2.msra.mxu0 0.0
        %991 = vmatprep.subr.mxu0 0.0
        %992 = vmatpush2.msra.mxu0 0.0
        %993 = vmatprep.subr.mxu0 0.0
        %994 = vmatpush2.msra.mxu0 0.0
        %995 = vmatprep.subr.mxu0 0.0
        %996 = vmatpush2.msra.mxu0 0.0
        %997 = vmatprep.subr.mxu0 0.0
        %998 = vmatpush2.msra.mxu0 0.0
        %999 = vmatprep.subr.mxu0 0.0
        %1000 = vmatpush2.msra.mxu0 0.0
        %1001 = vmatprep.subr.mxu0 0.0
        %1002 = vmatpush2.msra.mxu0 0.0
        %1003 = vmatprep.subr.mxu0 0.0
        %1004 = vmatpush2.msra.mxu0 0.0
        %1005 = vmatprep.subr.mxu0 0.0
        %1006 = vmatpush2.msra.mxu0 0.0
        %1007 = vmatprep.subr.mxu0 0.0
        %1008 = vmatpush2.msra.mxu0 0.0
        %1009 = vmatprep.subr.mxu0 0.0
        %1010 = vmatpush2.msra.mxu0 0.0
        %1011 = vmatprep.subr.mxu0 0.0
        %1012 = vmatpush2.msra.mxu0 0.0
        %1013 = vmatprep.subr.mxu0 0.0
        %1014 = vmatpush2.msra.mxu0 0.0
        %1015 = vmatprep.subr.mxu0 0.0
        %1016 = vmatpush2.msra.mxu0 0.0
        %1017 = vmatprep.mubr.f32.mxu0 0.0
        %1018 = vmatmul.mubr.f32.gmra.mxu0 %v945
        %v1019 = vpop.f32.mrf.mxu0
        %v1020 = vadd.f32 0.0, %v1019
        %v1021 = vpop.f32.mrf.mxu0
        %v1022 = vadd.f32 0.0, %v1021
        %1023 = vdwg.mxu0
        %1024 = vmatprep.subr.mxu0 0.0
        %1025 = vmatpush1.msra.mxu0 0.0
        %1026 = vmatprep.subr.mxu0 0.0
        %1027 = vmatpush1.msra.mxu0 0.0
        %1028 = vmatprep.subr.mxu0 0.0
        %1029 = vmatpush1.msra.mxu0 0.0
        %1030 = vmatprep.subr.mxu0 0.0
        %1031 = vmatpush1.msra.mxu0 0.0
        %1032 = vmatprep.subr.mxu0 0.0
        %1033 = vmatpush1.msra.mxu0 0.0
        %1034 = vmatprep.subr.mxu0 0.0
        %1035 = vmatpush1.msra.mxu0 0.0
        %1036 = vmatprep.subr.mxu0 0.0
        %1037 = vmatpush1.msra.mxu0 0.0
        %1038 = vmatprep.subr.mxu0 0.0
        %1039 = vmatpush1.msra.mxu0 0.0
        %1040 = vmatprep.subr.mxu0 0.0
        %1041 = vmatpush1.msra.mxu0 0.0
        %1042 = vmatprep.subr.mxu0 0.0
        %1043 = vmatpush1.msra.mxu0 0.0
        %1044 = vmatprep.subr.mxu0 0.0
        %1045 = vmatpush1.msra.mxu0 0.0
        %1046 = vmatprep.subr.mxu0 0.0
        %1047 = vmatpush1.msra.mxu0 0.0
        %1048 = vmatprep.subr.mxu0 0.0
        %1049 = vmatpush1.msra.mxu0 0.0
        %1050 = vmatprep.subr.mxu0 0.0
        %1051 = vmatpush1.msra.mxu0 0.0
        %1052 = vmatprep.subr.mxu0 0.0
        %1053 = vmatpush1.msra.mxu0 0.0
        %1054 = vmatprep.subr.mxu0 0.0
        %1055 = vmatpush1.msra.mxu0 %v951
        %1056 = vmatprep.subr.mxu0 0.0
        %1057 = vmatpush2.msra.mxu0 0.0
        %1058 = vmatprep.subr.mxu0 0.0
        %1059 = vmatpush2.msra.mxu0 0.0
        %1060 = vmatprep.subr.mxu0 0.0
        %1061 = vmatpush2.msra.mxu0 0.0
        %1062 = vmatprep.subr.mxu0 0.0
        %1063 = vmatpush2.msra.mxu0 0.0
        %1064 = vmatprep.subr.mxu0 0.0
        %1065 = vmatpush2.msra.mxu0 0.0
        %1066 = vmatprep.subr.mxu0 0.0
        %1067 = vmatpush2.msra.mxu0 0.0
        %1068 = vmatprep.subr.mxu0 0.0
        %1069 = vmatpush2.msra.mxu0 0.0
        %1070 = vmatprep.subr.mxu0 0.0
        %1071 = vmatpush2.msra.mxu0 0.0
        %1072 = vmatprep.subr.mxu0 0.0
        %1073 = vmatpush2.msra.mxu0 0.0
        %1074 = vmatprep.subr.mxu0 0.0
        %1075 = vmatpush2.msra.mxu0 0.0
        %1076 = vmatprep.subr.mxu0 0.0
        %1077 = vmatpush2.msra.mxu0 0.0
        %1078 = vmatprep.subr.mxu0 0.0
        %1079 = vmatpush2.msra.mxu0 0.0
        %1080 = vmatprep.subr.mxu0 0.0
        %1081 = vmatpush2.msra.mxu0 0.0
        %1082 = vmatprep.subr.mxu0 0.0
        %1083 = vmatpush2.msra.mxu0 0.0
        %1084 = vmatprep.subr.mxu0 0.0
        %1085 = vmatpush2.msra.mxu0 0.0
        %1086 = vmatprep.subr.mxu0 0.0
        %1087 = vmatpush2.msra.mxu0 0.0
        %1088 = vmatprep.mubr.f32.mxu0 0.0
        %1089 = vmatmul.mubr.f32.gmra.mxu0 %v945
        %v1090 = vpop.f32.mrf.mxu0
        %v1091 = vadd.f32 0.0, %v1090
        %v1092 = vpop.f32.mrf.mxu0
        %1093 = vdwg.mxu0
        %v1094 = vadd.f32 %v927, %v1020
        %v1095 = vadd.f32 %v928, %v1022
        %v1096 = vadd.f32 %v929, %v1091
        %s1097 = scalar_lea.vmem %s2, 40
        %v1098 = vld [vmem:[%s1097] sm:$0xff]
        %1099 = vrot.lane.b32.xlu0 %v272, 108
        %v1100 = vpop.permute.xlu0 %1099
        %1101 = vrot.lane.b32.xlu0 %v277, 108
        %v1102 = vpop.permute.xlu0 %1101
        %1103 = vrot.lane.b32.xlu0 %v273, 108
        %v1104 = vpop.permute.xlu0 %1103
        %1105 = vrot.lane.b32.xlu0 %v274, 108
        %v1106 = vpop.permute.xlu0 %1105
        %vm1107 = vcmask 883712
        %v1108 = vsel %vm1107, %v1100, %v1102
        %v1109 = vsel %vm1107, %v1102, %v1104
        %v1110 = vsel %vm1107, %v1104, %v1106
        %v1112 = vsel %vm294, %v1098, 0
        %v1114 = vsel %vm298, %v1108, 0
        %v1116 = vsel %vm298, %v1109, 0
        %v1118 = vsel %vm298, %v1110, 0
        %1120 = vmatprep.subr.mxu0 0.0
        %1121 = vmatpush1.msra.mxu0 0.0
        %1122 = vmatprep.subr.mxu0 0.0
        %1123 = vmatpush1.msra.mxu0 0.0
        %1124 = vmatprep.subr.mxu0 0.0
        %1125 = vmatpush1.msra.mxu0 0.0
        %1126 = vmatprep.subr.mxu0 0.0
        %1127 = vmatpush1.msra.mxu0 0.0
        %1128 = vmatprep.subr.mxu0 0.0
        %1129 = vmatpush1.msra.mxu0 0.0
        %1130 = vmatprep.subr.mxu0 0.0
        %1131 = vmatpush1.msra.mxu0 0.0
        %1132 = vmatprep.subr.mxu0 0.0
        %1133 = vmatpush1.msra.mxu0 0.0
        %1134 = vmatprep.subr.mxu0 0.0
        %1135 = vmatpush1.msra.mxu0 0.0
        %1136 = vmatprep.subr.mxu0 0.0
        %1137 = vmatpush1.msra.mxu0 0.0
        %1138 = vmatprep.subr.mxu0 0.0
        %1139 = vmatpush1.msra.mxu0 0.0
        %1140 = vmatprep.subr.mxu0 0.0
        %1141 = vmatpush1.msra.mxu0 0.0
        %1142 = vmatprep.subr.mxu0 0.0
        %1143 = vmatpush1.msra.mxu0 0.0
        %1144 = vmatprep.subr.mxu0 0.0
        %1145 = vmatpush1.msra.mxu0 0.0
        %1146 = vmatprep.subr.mxu0 0.0
        %1147 = vmatpush1.msra.mxu0 0.0
        %1148 = vmatprep.subr.mxu0 0.0
        %1149 = vmatpush1.msra.mxu0 0.0
        %1150 = vmatprep.subr.mxu0 %v1116
        %1151 = vmatpush1.msra.mxu0 %v1114
        %1152 = vmatprep.subr.mxu0 0.0
        %1153 = vmatpush2.msra.mxu0 0.0
        %1154 = vmatprep.subr.mxu0 0.0
        %1155 = vmatpush2.msra.mxu0 0.0
        %1156 = vmatprep.subr.mxu0 0.0
        %1157 = vmatpush2.msra.mxu0 0.0
        %1158 = vmatprep.subr.mxu0 0.0
        %1159 = vmatpush2.msra.mxu0 0.0
        %1160 = vmatprep.subr.mxu0 0.0
        %1161 = vmatpush2.msra.mxu0 0.0
        %1162 = vmatprep.subr.mxu0 0.0
        %1163 = vmatpush2.msra.mxu0 0.0
        %1164 = vmatprep.subr.mxu0 0.0
        %1165 = vmatpush2.msra.mxu0 0.0
        %1166 = vmatprep.subr.mxu0 0.0
        %1167 = vmatpush2.msra.mxu0 0.0
        %1168 = vmatprep.subr.mxu0 0.0
        %1169 = vmatpush2.msra.mxu0 0.0
        %1170 = vmatprep.subr.mxu0 0.0
        %1171 = vmatpush2.msra.mxu0 0.0
        %1172 = vmatprep.subr.mxu0 0.0
        %1173 = vmatpush2.msra.mxu0 0.0
        %1174 = vmatprep.subr.mxu0 0.0
        %1175 = vmatpush2.msra.mxu0 0.0
        %1176 = vmatprep.subr.mxu0 0.0
        %1177 = vmatpush2.msra.mxu0 0.0
        %1178 = vmatprep.subr.mxu0 0.0
        %1179 = vmatpush2.msra.mxu0 0.0
        %1180 = vmatprep.subr.mxu0 0.0
        %1181 = vmatpush2.msra.mxu0 0.0
        %1182 = vmatprep.subr.mxu0 0.0
        %1183 = vmatpush2.msra.mxu0 0.0
        %1184 = vmatprep.mubr.f32.mxu0 0.0
        %1185 = vmatmul.mubr.f32.gmra.mxu0 %v1112
        %v1186 = vpop.f32.mrf.mxu0
        %v1187 = vadd.f32 0.0, %v1186
        %v1188 = vpop.f32.mrf.mxu0
        %v1189 = vadd.f32 0.0, %v1188
        %1190 = vdwg.mxu0
        %1191 = vmatprep.subr.mxu0 0.0
        %1192 = vmatpush1.msra.mxu0 0.0
        %1193 = vmatprep.subr.mxu0 0.0
        %1194 = vmatpush1.msra.mxu0 0.0
        %1195 = vmatprep.subr.mxu0 0.0
        %1196 = vmatpush1.msra.mxu0 0.0
        %1197 = vmatprep.subr.mxu0 0.0
        %1198 = vmatpush1.msra.mxu0 0.0
        %1199 = vmatprep.subr.mxu0 0.0
        %1200 = vmatpush1.msra.mxu0 0.0
        %1201 = vmatprep.subr.mxu0 0.0
        %1202 = vmatpush1.msra.mxu0 0.0
        %1203 = vmatprep.subr.mxu0 0.0
        %1204 = vmatpush1.msra.mxu0 0.0
        %1205 = vmatprep.subr.mxu0 0.0
        %1206 = vmatpush1.msra.mxu0 0.0
        %1207 = vmatprep.subr.mxu0 0.0
        %1208 = vmatpush1.msra.mxu0 0.0
        %1209 = vmatprep.subr.mxu0 0.0
        %1210 = vmatpush1.msra.mxu0 0.0
        %1211 = vmatprep.subr.mxu0 0.0
        %1212 = vmatpush1.msra.mxu0 0.0
        %1213 = vmatprep.subr.mxu0 0.0
        %1214 = vmatpush1.msra.mxu0 0.0
        %1215 = vmatprep.subr.mxu0 0.0
        %1216 = vmatpush1.msra.mxu0 0.0
        %1217 = vmatprep.subr.mxu0 0.0
        %1218 = vmatpush1.msra.mxu0 0.0
        %1219 = vmatprep.subr.mxu0 0.0
        %1220 = vmatpush1.msra.mxu0 0.0
        %1221 = vmatprep.subr.mxu0 0.0
        %1222 = vmatpush1.msra.mxu0 %v1118
        %1223 = vmatprep.subr.mxu0 0.0
        %1224 = vmatpush2.msra.mxu0 0.0
        %1225 = vmatprep.subr.mxu0 0.0
        %1226 = vmatpush2.msra.mxu0 0.0
        %1227 = vmatprep.subr.mxu0 0.0
        %1228 = vmatpush2.msra.mxu0 0.0
        %1229 = vmatprep.subr.mxu0 0.0
        %1230 = vmatpush2.msra.mxu0 0.0
        %1231 = vmatprep.subr.mxu0 0.0
        %1232 = vmatpush2.msra.mxu0 0.0
        %1233 = vmatprep.subr.mxu0 0.0
        %1234 = vmatpush2.msra.mxu0 0.0
        %1235 = vmatprep.subr.mxu0 0.0
        %1236 = vmatpush2.msra.mxu0 0.0
        %1237 = vmatprep.subr.mxu0 0.0
        %1238 = vmatpush2.msra.mxu0 0.0
        %1239 = vmatprep.subr.mxu0 0.0
        %1240 = vmatpush2.msra.mxu0 0.0
        %1241 = vmatprep.subr.mxu0 0.0
        %1242 = vmatpush2.msra.mxu0 0.0
        %1243 = vmatprep.subr.mxu0 0.0
        %1244 = vmatpush2.msra.mxu0 0.0
        %1245 = vmatprep.subr.mxu0 0.0
        %1246 = vmatpush2.msra.mxu0 0.0
        %1247 = vmatprep.subr.mxu0 0.0
        %1248 = vmatpush2.msra.mxu0 0.0
        %1249 = vmatprep.subr.mxu0 0.0
        %1250 = vmatpush2.msra.mxu0 0.0
        %1251 = vmatprep.subr.mxu0 0.0
        %1252 = vmatpush2.msra.mxu0 0.0
        %1253 = vmatprep.subr.mxu0 0.0
        %1254 = vmatpush2.msra.mxu0 0.0
        %1255 = vmatprep.mubr.f32.mxu0 0.0
        %1256 = vmatmul.mubr.f32.gmra.mxu0 %v1112
        %v1257 = vpop.f32.mrf.mxu0
        %v1258 = vadd.f32 0.0, %v1257
        %v1259 = vpop.f32.mrf.mxu0
        %1260 = vdwg.mxu0
        %v1261 = vadd.f32 %v1094, %v1187
        %v1262 = vadd.f32 %v1095, %v1189
        %v1263 = vadd.f32 %v1096, %v1258
        %s1264 = scalar_lea.vmem %s2, 48
        %v1265 = vld [vmem:[%s1264] sm:$0xff]
        %1266 = vrot.lane.b32.xlu0 %v272, 92
        %v1267 = vpop.permute.xlu0 %1266
        %1268 = vrot.lane.b32.xlu0 %v277, 92
        %v1269 = vpop.permute.xlu0 %1268
        %1270 = vrot.lane.b32.xlu0 %v273, 92
        %v1271 = vpop.permute.xlu0 %1270
        %1272 = vrot.lane.b32.xlu0 %v274, 92
        %v1273 = vpop.permute.xlu0 %1272
        %vm1274 = vcmask 752640
        %v1275 = vsel %vm1274, %v1267, %v1269
        %v1276 = vsel %vm1274, %v1269, %v1271
        %v1277 = vsel %vm1274, %v1271, %v1273
        %v1279 = vsel %vm294, %v1265, 0
        %v1281 = vsel %vm298, %v1275, 0
        %v1283 = vsel %vm298, %v1276, 0
        %v1285 = vsel %vm298, %v1277, 0
        %1287 = vmatprep.subr.mxu0 0.0
        %1288 = vmatpush1.msra.mxu0 0.0
        %1289 = vmatprep.subr.mxu0 0.0
        %1290 = vmatpush1.msra.mxu0 0.0
        %1291 = vmatprep.subr.mxu0 0.0
        %1292 = vmatpush1.msra.mxu0 0.0
        %1293 = vmatprep.subr.mxu0 0.0
        %1294 = vmatpush1.msra.mxu0 0.0
        %1295 = vmatprep.subr.mxu0 0.0
        %1296 = vmatpush1.msra.mxu0 0.0
        %1297 = vmatprep.subr.mxu0 0.0
        %1298 = vmatpush1.msra.mxu0 0.0
        %1299 = vmatprep.subr.mxu0 0.0
        %1300 = vmatpush1.msra.mxu0 0.0
        %1301 = vmatprep.subr.mxu0 0.0
        %1302 = vmatpush1.msra.mxu0 0.0
        %1303 = vmatprep.subr.mxu0 0.0
        %1304 = vmatpush1.msra.mxu0 0.0
        %1305 = vmatprep.subr.mxu0 0.0
        %1306 = vmatpush1.msra.mxu0 0.0
        %1307 = vmatprep.subr.mxu0 0.0
        %1308 = vmatpush1.msra.mxu0 0.0
        %1309 = vmatprep.subr.mxu0 0.0
        %1310 = vmatpush1.msra.mxu0 0.0
        %1311 = vmatprep.subr.mxu0 0.0
        %1312 = vmatpush1.msra.mxu0 0.0
        %1313 = vmatprep.subr.mxu0 0.0
        %1314 = vmatpush1.msra.mxu0 0.0
        %1315 = vmatprep.subr.mxu0 0.0
        %1316 = vmatpush1.msra.mxu0 0.0
        %1317 = vmatprep.subr.mxu0 %v1283
        %1318 = vmatpush1.msra.mxu0 %v1281
        %1319 = vmatprep.subr.mxu0 0.0
        %1320 = vmatpush2.msra.mxu0 0.0
        %1321 = vmatprep.subr.mxu0 0.0
        %1322 = vmatpush2.msra.mxu0 0.0
        %1323 = vmatprep.subr.mxu0 0.0
        %1324 = vmatpush2.msra.mxu0 0.0
        %1325 = vmatprep.subr.mxu0 0.0
        %1326 = vmatpush2.msra.mxu0 0.0
        %1327 = vmatprep.subr.mxu0 0.0
        %1328 = vmatpush2.msra.mxu0 0.0
        %1329 = vmatprep.subr.mxu0 0.0
        %1330 = vmatpush2.msra.mxu0 0.0
        %1331 = vmatprep.subr.mxu0 0.0
        %1332 = vmatpush2.msra.mxu0 0.0
        %1333 = vmatprep.subr.mxu0 0.0
        %1334 = vmatpush2.msra.mxu0 0.0
        %1335 = vmatprep.subr.mxu0 0.0
        %1336 = vmatpush2.msra.mxu0 0.0
        %1337 = vmatprep.subr.mxu0 0.0
        %1338 = vmatpush2.msra.mxu0 0.0
        %1339 = vmatprep.subr.mxu0 0.0
        %1340 = vmatpush2.msra.mxu0 0.0
        %1341 = vmatprep.subr.mxu0 0.0
        %1342 = vmatpush2.msra.mxu0 0.0
        %1343 = vmatprep.subr.mxu0 0.0
        %1344 = vmatpush2.msra.mxu0 0.0
        %1345 = vmatprep.subr.mxu0 0.0
        %1346 = vmatpush2.msra.mxu0 0.0
        %1347 = vmatprep.subr.mxu0 0.0
        %1348 = vmatpush2.msra.mxu0 0.0
        %1349 = vmatprep.subr.mxu0 0.0
        %1350 = vmatpush2.msra.mxu0 0.0
        %1351 = vmatprep.mubr.f32.mxu0 0.0
        %1352 = vmatmul.mubr.f32.gmra.mxu0 %v1279
        %v1353 = vpop.f32.mrf.mxu0
        %v1354 = vadd.f32 0.0, %v1353
        %v1355 = vpop.f32.mrf.mxu0
        %v1356 = vadd.f32 0.0, %v1355
        %1357 = vdwg.mxu0
        %1358 = vmatprep.subr.mxu0 0.0
        %1359 = vmatpush1.msra.mxu0 0.0
        %1360 = vmatprep.subr.mxu0 0.0
        %1361 = vmatpush1.msra.mxu0 0.0
        %1362 = vmatprep.subr.mxu0 0.0
        %1363 = vmatpush1.msra.mxu0 0.0
        %1364 = vmatprep.subr.mxu0 0.0
        %1365 = vmatpush1.msra.mxu0 0.0
        %1366 = vmatprep.subr.mxu0 0.0
        %1367 = vmatpush1.msra.mxu0 0.0
        %1368 = vmatprep.subr.mxu0 0.0
        %1369 = vmatpush1.msra.mxu0 0.0
        %1370 = vmatprep.subr.mxu0 0.0
        %1371 = vmatpush1.msra.mxu0 0.0
        %1372 = vmatprep.subr.mxu0 0.0
        %1373 = vmatpush1.msra.mxu0 0.0
        %1374 = vmatprep.subr.mxu0 0.0
        %1375 = vmatpush1.msra.mxu0 0.0
        %1376 = vmatprep.subr.mxu0 0.0
        %1377 = vmatpush1.msra.mxu0 0.0
        %1378 = vmatprep.subr.mxu0 0.0
        %1379 = vmatpush1.msra.mxu0 0.0
        %1380 = vmatprep.subr.mxu0 0.0
        %1381 = vmatpush1.msra.mxu0 0.0
        %1382 = vmatprep.subr.mxu0 0.0
        %1383 = vmatpush1.msra.mxu0 0.0
        %1384 = vmatprep.subr.mxu0 0.0
        %1385 = vmatpush1.msra.mxu0 0.0
        %1386 = vmatprep.subr.mxu0 0.0
        %1387 = vmatpush1.msra.mxu0 0.0
        %1388 = vmatprep.subr.mxu0 0.0
        %1389 = vmatpush1.msra.mxu0 %v1285
        %1390 = vmatprep.subr.mxu0 0.0
        %1391 = vmatpush2.msra.mxu0 0.0
        %1392 = vmatprep.subr.mxu0 0.0
        %1393 = vmatpush2.msra.mxu0 0.0
        %1394 = vmatprep.subr.mxu0 0.0
        %1395 = vmatpush2.msra.mxu0 0.0
        %1396 = vmatprep.subr.mxu0 0.0
        %1397 = vmatpush2.msra.mxu0 0.0
        %1398 = vmatprep.subr.mxu0 0.0
        %1399 = vmatpush2.msra.mxu0 0.0
        %1400 = vmatprep.subr.mxu0 0.0
        %1401 = vmatpush2.msra.mxu0 0.0
        %1402 = vmatprep.subr.mxu0 0.0
        %1403 = vmatpush2.msra.mxu0 0.0
        %1404 = vmatprep.subr.mxu0 0.0
        %1405 = vmatpush2.msra.mxu0 0.0
        %1406 = vmatprep.subr.mxu0 0.0
        %1407 = vmatpush2.msra.mxu0 0.0
        %1408 = vmatprep.subr.mxu0 0.0
        %1409 = vmatpush2.msra.mxu0 0.0
        %1410 = vmatprep.subr.mxu0 0.0
        %1411 = vmatpush2.msra.mxu0 0.0
        %1412 = vmatprep.subr.mxu0 0.0
        %1413 = vmatpush2.msra.mxu0 0.0
        %1414 = vmatprep.subr.mxu0 0.0
        %1415 = vmatpush2.msra.mxu0 0.0
        %1416 = vmatprep.subr.mxu0 0.0
        %1417 = vmatpush2.msra.mxu0 0.0
        %1418 = vmatprep.subr.mxu0 0.0
        %1419 = vmatpush2.msra.mxu0 0.0
        %1420 = vmatprep.subr.mxu0 0.0
        %1421 = vmatpush2.msra.mxu0 0.0
        %1422 = vmatprep.mubr.f32.mxu0 0.0
        %1423 = vmatmul.mubr.f32.gmra.mxu0 %v1279
        %v1424 = vpop.f32.mrf.mxu0
        %v1425 = vadd.f32 0.0, %v1424
        %v1426 = vpop.f32.mrf.mxu0
        %1427 = vdwg.mxu0
        %v1428 = vadd.f32 %v1261, %v1354
        %v1429 = vadd.f32 %v1262, %v1356
        %v1430 = vadd.f32 %v1263, %v1425
        %s1431 = scalar_lea.vmem %s2, 56
        %v1432 = vld [vmem:[%s1431] sm:$0xff]
        %1433 = vrot.lane.b32.xlu0 %v272, 91
        %v1434 = vpop.permute.xlu0 %1433
        %1435 = vrot.lane.b32.xlu0 %v277, 91
        %v1436 = vpop.permute.xlu0 %1435
        %1437 = vrot.lane.b32.xlu0 %v273, 91
        %v1438 = vpop.permute.xlu0 %1437
        %1439 = vrot.lane.b32.xlu0 %v274, 91
        %v1440 = vpop.permute.xlu0 %1439
        %vm1441 = vcmask 744448
        %v1442 = vsel %vm1441, %v1434, %v1436
        %v1443 = vsel %vm1441, %v1436, %v1438
        %v1444 = vsel %vm1441, %v1438, %v1440
        %v1446 = vsel %vm294, %v1432, 0
        %v1448 = vsel %vm298, %v1442, 0
        %v1450 = vsel %vm298, %v1443, 0
        %v1452 = vsel %vm298, %v1444, 0
        %1454 = vmatprep.subr.mxu0 0.0
        %1455 = vmatpush1.msra.mxu0 0.0
        %1456 = vmatprep.subr.mxu0 0.0
        %1457 = vmatpush1.msra.mxu0 0.0
        %1458 = vmatprep.subr.mxu0 0.0
        %1459 = vmatpush1.msra.mxu0 0.0
        %1460 = vmatprep.subr.mxu0 0.0
        %1461 = vmatpush1.msra.mxu0 0.0
        %1462 = vmatprep.subr.mxu0 0.0
        %1463 = vmatpush1.msra.mxu0 0.0
        %1464 = vmatprep.subr.mxu0 0.0
        %1465 = vmatpush1.msra.mxu0 0.0
        %1466 = vmatprep.subr.mxu0 0.0
        %1467 = vmatpush1.msra.mxu0 0.0
        %1468 = vmatprep.subr.mxu0 0.0
        %1469 = vmatpush1.msra.mxu0 0.0
        %1470 = vmatprep.subr.mxu0 0.0
        %1471 = vmatpush1.msra.mxu0 0.0
        %1472 = vmatprep.subr.mxu0 0.0
        %1473 = vmatpush1.msra.mxu0 0.0
        %1474 = vmatprep.subr.mxu0 0.0
        %1475 = vmatpush1.msra.mxu0 0.0
        %1476 = vmatprep.subr.mxu0 0.0
        %1477 = vmatpush1.msra.mxu0 0.0
        %1478 = vmatprep.subr.mxu0 0.0
        %1479 = vmatpush1.msra.mxu0 0.0
        %1480 = vmatprep.subr.mxu0 0.0
        %1481 = vmatpush1.msra.mxu0 0.0
        %1482 = vmatprep.subr.mxu0 0.0
        %1483 = vmatpush1.msra.mxu0 0.0
        %1484 = vmatprep.subr.mxu0 %v1450
        %1485 = vmatpush1.msra.mxu0 %v1448
        %1486 = vmatprep.subr.mxu0 0.0
        %1487 = vmatpush2.msra.mxu0 0.0
        %1488 = vmatprep.subr.mxu0 0.0
        %1489 = vmatpush2.msra.mxu0 0.0
        %1490 = vmatprep.subr.mxu0 0.0
        %1491 = vmatpush2.msra.mxu0 0.0
        %1492 = vmatprep.subr.mxu0 0.0
        %1493 = vmatpush2.msra.mxu0 0.0
        %1494 = vmatprep.subr.mxu0 0.0
        %1495 = vmatpush2.msra.mxu0 0.0
        %1496 = vmatprep.subr.mxu0 0.0
        %1497 = vmatpush2.msra.mxu0 0.0
        %1498 = vmatprep.subr.mxu0 0.0
        %1499 = vmatpush2.msra.mxu0 0.0
        %1500 = vmatprep.subr.mxu0 0.0
        %1501 = vmatpush2.msra.mxu0 0.0
        %1502 = vmatprep.subr.mxu0 0.0
        %1503 = vmatpush2.msra.mxu0 0.0
        %1504 = vmatprep.subr.mxu0 0.0
        %1505 = vmatpush2.msra.mxu0 0.0
        %1506 = vmatprep.subr.mxu0 0.0
        %1507 = vmatpush2.msra.mxu0 0.0
        %1508 = vmatprep.subr.mxu0 0.0
        %1509 = vmatpush2.msra.mxu0 0.0
        %1510 = vmatprep.subr.mxu0 0.0
        %1511 = vmatpush2.msra.mxu0 0.0
        %1512 = vmatprep.subr.mxu0 0.0
        %1513 = vmatpush2.msra.mxu0 0.0
        %1514 = vmatprep.subr.mxu0 0.0
        %1515 = vmatpush2.msra.mxu0 0.0
        %1516 = vmatprep.subr.mxu0 0.0
        %1517 = vmatpush2.msra.mxu0 0.0
        %1518 = vmatprep.mubr.f32.mxu0 0.0
        %1519 = vmatmul.mubr.f32.gmra.mxu0 %v1446
        %v1520 = vpop.f32.mrf.mxu0
        %v1521 = vadd.f32 0.0, %v1520
        %v1522 = vpop.f32.mrf.mxu0
        %v1523 = vadd.f32 0.0, %v1522
        %1524 = vdwg.mxu0
        %1525 = vmatprep.subr.mxu0 0.0
        %1526 = vmatpush1.msra.mxu0 0.0
        %1527 = vmatprep.subr.mxu0 0.0
        %1528 = vmatpush1.msra.mxu0 0.0
        %1529 = vmatprep.subr.mxu0 0.0
        %1530 = vmatpush1.msra.mxu0 0.0
        %1531 = vmatprep.subr.mxu0 0.0
        %1532 = vmatpush1.msra.mxu0 0.0
        %1533 = vmatprep.subr.mxu0 0.0
        %1534 = vmatpush1.msra.mxu0 0.0
        %1535 = vmatprep.subr.mxu0 0.0
        %1536 = vmatpush1.msra.mxu0 0.0
        %1537 = vmatprep.subr.mxu0 0.0
        %1538 = vmatpush1.msra.mxu0 0.0
        %1539 = vmatprep.subr.mxu0 0.0
        %1540 = vmatpush1.msra.mxu0 0.0
        %1541 = vmatprep.subr.mxu0 0.0
        %1542 = vmatpush1.msra.mxu0 0.0
        %1543 = vmatprep.subr.mxu0 0.0
        %1544 = vmatpush1.msra.mxu0 0.0
        %1545 = vmatprep.subr.mxu0 0.0
        %1546 = vmatpush1.msra.mxu0 0.0
        %1547 = vmatprep.subr.mxu0 0.0
        %1548 = vmatpush1.msra.mxu0 0.0
        %1549 = vmatprep.subr.mxu0 0.0
        %1550 = vmatpush1.msra.mxu0 0.0
        %1551 = vmatprep.subr.mxu0 0.0
        %1552 = vmatpush1.msra.mxu0 0.0
        %1553 = vmatprep.subr.mxu0 0.0
        %1554 = vmatpush1.msra.mxu0 0.0
        %1555 = vmatprep.subr.mxu0 0.0
        %1556 = vmatpush1.msra.mxu0 %v1452
        %1557 = vmatprep.subr.mxu0 0.0
        %1558 = vmatpush2.msra.mxu0 0.0
        %1559 = vmatprep.subr.mxu0 0.0
        %1560 = vmatpush2.msra.mxu0 0.0
        %1561 = vmatprep.subr.mxu0 0.0
        %1562 = vmatpush2.msra.mxu0 0.0
        %1563 = vmatprep.subr.mxu0 0.0
        %1564 = vmatpush2.msra.mxu0 0.0
        %1565 = vmatprep.subr.mxu0 0.0
        %1566 = vmatpush2.msra.mxu0 0.0
        %1567 = vmatprep.subr.mxu0 0.0
        %1568 = vmatpush2.msra.mxu0 0.0
        %1569 = vmatprep.subr.mxu0 0.0
        %1570 = vmatpush2.msra.mxu0 0.0
        %1571 = vmatprep.subr.mxu0 0.0
        %1572 = vmatpush2.msra.mxu0 0.0
        %1573 = vmatprep.subr.mxu0 0.0
        %1574 = vmatpush2.msra.mxu0 0.0
        %1575 = vmatprep.subr.mxu0 0.0
        %1576 = vmatpush2.msra.mxu0 0.0
        %1577 = vmatprep.subr.mxu0 0.0
        %1578 = vmatpush2.msra.mxu0 0.0
        %1579 = vmatprep.subr.mxu0 0.0
        %1580 = vmatpush2.msra.mxu0 0.0
        %1581 = vmatprep.subr.mxu0 0.0
        %1582 = vmatpush2.msra.mxu0 0.0
        %1583 = vmatprep.subr.mxu0 0.0
        %1584 = vmatpush2.msra.mxu0 0.0
        %1585 = vmatprep.subr.mxu0 0.0
        %1586 = vmatpush2.msra.mxu0 0.0
        %1587 = vmatprep.subr.mxu0 0.0
        %1588 = vmatpush2.msra.mxu0 0.0
        %1589 = vmatprep.mubr.f32.mxu0 0.0
        %1590 = vmatmul.mubr.f32.gmra.mxu0 %v1446
        %v1591 = vpop.f32.mrf.mxu0
        %v1592 = vadd.f32 0.0, %v1591
        %v1593 = vpop.f32.mrf.mxu0
        %1594 = vdwg.mxu0
        %v1595 = vadd.f32 %v1428, %v1521
        %v1596 = vadd.f32 %v1429, %v1523
        %v1597 = vadd.f32 %v1430, %v1592
        %s1598 = scalar_lea.vmem %s2, 64
        %v1599 = vld [vmem:[%s1598] sm:$0xff]
        %1600 = vrot.lane.b32.xlu0 %v272, 90
        %v1601 = vpop.permute.xlu0 %1600
        %1602 = vrot.lane.b32.xlu0 %v277, 90
        %v1603 = vpop.permute.xlu0 %1602
        %1604 = vrot.lane.b32.xlu0 %v273, 90
        %v1605 = vpop.permute.xlu0 %1604
        %1606 = vrot.lane.b32.xlu0 %v274, 90
        %v1607 = vpop.permute.xlu0 %1606
        %vm1608 = vcmask 736256
        %v1609 = vsel %vm1608, %v1601, %v1603
        %v1610 = vsel %vm1608, %v1603, %v1605
        %v1611 = vsel %vm1608, %v1605, %v1607
        %v1613 = vsel %vm294, %v1599, 0
        %v1615 = vsel %vm298, %v1609, 0
        %v1617 = vsel %vm298, %v1610, 0
        %v1619 = vsel %vm298, %v1611, 0
        %1621 = vmatprep.subr.mxu0 0.0
        %1622 = vmatpush1.msra.mxu0 0.0
        %1623 = vmatprep.subr.mxu0 0.0
        %1624 = vmatpush1.msra.mxu0 0.0
        %1625 = vmatprep.subr.mxu0 0.0
        %1626 = vmatpush1.msra.mxu0 0.0
        %1627 = vmatprep.subr.mxu0 0.0
        %1628 = vmatpush1.msra.mxu0 0.0
        %1629 = vmatprep.subr.mxu0 0.0
        %1630 = vmatpush1.msra.mxu0 0.0
        %1631 = vmatprep.subr.mxu0 0.0
        %1632 = vmatpush1.msra.mxu0 0.0
        %1633 = vmatprep.subr.mxu0 0.0
        %1634 = vmatpush1.msra.mxu0 0.0
        %1635 = vmatprep.subr.mxu0 0.0
        %1636 = vmatpush1.msra.mxu0 0.0
        %1637 = vmatprep.subr.mxu0 0.0
        %1638 = vmatpush1.msra.mxu0 0.0
        %1639 = vmatprep.subr.mxu0 0.0
        %1640 = vmatpush1.msra.mxu0 0.0
        %1641 = vmatprep.subr.mxu0 0.0
        %1642 = vmatpush1.msra.mxu0 0.0
        %1643 = vmatprep.subr.mxu0 0.0
        %1644 = vmatpush1.msra.mxu0 0.0
        %1645 = vmatprep.subr.mxu0 0.0
        %1646 = vmatpush1.msra.mxu0 0.0
        %1647 = vmatprep.subr.mxu0 0.0
        %1648 = vmatpush1.msra.mxu0 0.0
        %1649 = vmatprep.subr.mxu0 0.0
        %1650 = vmatpush1.msra.mxu0 0.0
        %1651 = vmatprep.subr.mxu0 %v1617
        %1652 = vmatpush1.msra.mxu0 %v1615
        %1653 = vmatprep.subr.mxu0 0.0
        %1654 = vmatpush2.msra.mxu0 0.0
        %1655 = vmatprep.subr.mxu0 0.0
        %1656 = vmatpush2.msra.mxu0 0.0
        %1657 = vmatprep.subr.mxu0 0.0
        %1658 = vmatpush2.msra.mxu0 0.0
        %1659 = vmatprep.subr.mxu0 0.0
        %1660 = vmatpush2.msra.mxu0 0.0
        %1661 = vmatprep.subr.mxu0 0.0
        %1662 = vmatpush2.msra.mxu0 0.0
        %1663 = vmatprep.subr.mxu0 0.0
        %1664 = vmatpush2.msra.mxu0 0.0
        %1665 = vmatprep.subr.mxu0 0.0
        %1666 = vmatpush2.msra.mxu0 0.0
        %1667 = vmatprep.subr.mxu0 0.0
        %1668 = vmatpush2.msra.mxu0 0.0
        %1669 = vmatprep.subr.mxu0 0.0
        %1670 = vmatpush2.msra.mxu0 0.0
        %1671 = vmatprep.subr.mxu0 0.0
        %1672 = vmatpush2.msra.mxu0 0.0
        %1673 = vmatprep.subr.mxu0 0.0
        %1674 = vmatpush2.msra.mxu0 0.0
        %1675 = vmatprep.subr.mxu0 0.0
        %1676 = vmatpush2.msra.mxu0 0.0
        %1677 = vmatprep.subr.mxu0 0.0
        %1678 = vmatpush2.msra.mxu0 0.0
        %1679 = vmatprep.subr.mxu0 0.0
        %1680 = vmatpush2.msra.mxu0 0.0
        %1681 = vmatprep.subr.mxu0 0.0
        %1682 = vmatpush2.msra.mxu0 0.0
        %1683 = vmatprep.subr.mxu0 0.0
        %1684 = vmatpush2.msra.mxu0 0.0
        %1685 = vmatprep.mubr.f32.mxu0 0.0
        %1686 = vmatmul.mubr.f32.gmra.mxu0 %v1613
        %v1687 = vpop.f32.mrf.mxu0
        %v1688 = vadd.f32 0.0, %v1687
        %v1689 = vpop.f32.mrf.mxu0
        %v1690 = vadd.f32 0.0, %v1689
        %1691 = vdwg.mxu0
        %1692 = vmatprep.subr.mxu0 0.0
        %1693 = vmatpush1.msra.mxu0 0.0
        %1694 = vmatprep.subr.mxu0 0.0
        %1695 = vmatpush1.msra.mxu0 0.0
        %1696 = vmatprep.subr.mxu0 0.0
        %1697 = vmatpush1.msra.mxu0 0.0
        %1698 = vmatprep.subr.mxu0 0.0
        %1699 = vmatpush1.msra.mxu0 0.0
        %1700 = vmatprep.subr.mxu0 0.0
        %1701 = vmatpush1.msra.mxu0 0.0
        %1702 = vmatprep.subr.mxu0 0.0
        %1703 = vmatpush1.msra.mxu0 0.0
        %1704 = vmatprep.subr.mxu0 0.0
        %1705 = vmatpush1.msra.mxu0 0.0
        %1706 = vmatprep.subr.mxu0 0.0
        %1707 = vmatpush1.msra.mxu0 0.0
        %1708 = vmatprep.subr.mxu0 0.0
        %1709 = vmatpush1.msra.mxu0 0.0
        %1710 = vmatprep.subr.mxu0 0.0
        %1711 = vmatpush1.msra.mxu0 0.0
        %1712 = vmatprep.subr.mxu0 0.0
        %1713 = vmatpush1.msra.mxu0 0.0
        %1714 = vmatprep.subr.mxu0 0.0
        %1715 = vmatpush1.msra.mxu0 0.0
        %1716 = vmatprep.subr.mxu0 0.0
        %1717 = vmatpush1.msra.mxu0 0.0
        %1718 = vmatprep.subr.mxu0 0.0
        %1719 = vmatpush1.msra.mxu0 0.0
        %1720 = vmatprep.subr.mxu0 0.0
        %1721 = vmatpush1.msra.mxu0 0.0
        %1722 = vmatprep.subr.mxu0 0.0
        %1723 = vmatpush1.msra.mxu0 %v1619
        %1724 = vmatprep.subr.mxu0 0.0
        %1725 = vmatpush2.msra.mxu0 0.0
        %1726 = vmatprep.subr.mxu0 0.0
        %1727 = vmatpush2.msra.mxu0 0.0
        %1728 = vmatprep.subr.mxu0 0.0
        %1729 = vmatpush2.msra.mxu0 0.0
        %1730 = vmatprep.subr.mxu0 0.0
        %1731 = vmatpush2.msra.mxu0 0.0
        %1732 = vmatprep.subr.mxu0 0.0
        %1733 = vmatpush2.msra.mxu0 0.0
        %1734 = vmatprep.subr.mxu0 0.0
        %1735 = vmatpush2.msra.mxu0 0.0
        %1736 = vmatprep.subr.mxu0 0.0
        %1737 = vmatpush2.msra.mxu0 0.0
        %1738 = vmatprep.subr.mxu0 0.0
        %1739 = vmatpush2.msra.mxu0 0.0
        %1740 = vmatprep.subr.mxu0 0.0
        %1741 = vmatpush2.msra.mxu0 0.0
        %1742 = vmatprep.subr.mxu0 0.0
        %1743 = vmatpush2.msra.mxu0 0.0
        %1744 = vmatprep.subr.mxu0 0.0
        %1745 = vmatpush2.msra.mxu0 0.0
        %1746 = vmatprep.subr.mxu0 0.0
        %1747 = vmatpush2.msra.mxu0 0.0
        %1748 = vmatprep.subr.mxu0 0.0
        %1749 = vmatpush2.msra.mxu0 0.0
        %1750 = vmatprep.subr.mxu0 0.0
        %1751 = vmatpush2.msra.mxu0 0.0
        %1752 = vmatprep.subr.mxu0 0.0
        %1753 = vmatpush2.msra.mxu0 0.0
        %1754 = vmatprep.subr.mxu0 0.0
        %1755 = vmatpush2.msra.mxu0 0.0
        %1756 = vmatprep.mubr.f32.mxu0 0.0
        %1757 = vmatmul.mubr.f32.gmra.mxu0 %v1613
        %v1758 = vpop.f32.mrf.mxu0
        %v1759 = vadd.f32 0.0, %v1758
        %v1760 = vpop.f32.mrf.mxu0
        %1761 = vdwg.mxu0
        %v1762 = vadd.f32 %v1595, %v1688
        %v1763 = vadd.f32 %v1596, %v1690
        %v1764 = vadd.f32 %v1597, %v1759
        %v1765 = vld [vmem:[%s3] sm:$0xff]
        %1767 = vset.pattern.permute.xlu0 0
        %1768 = vperm.xlu0 %1767, %v1765
        %v1769 = vpop.permute.xlu0 %1768
        %v1771 = vadd.f32 %v1762, %v1769
        %v1772 = vadd.f32 %v1763, %v1769
        %v1773 = vadd.f32 %v1764, %v1769
        %1774 = vst [vmem:[%s248] sm:$0xff] %v1771
        %1775 = vst [vmem:[%s248 + $0x8] sm:$0xff] %v1772
        %1776 = vst [vmem:[%s248 + $0x10] sm:$0xff] %v1773
        %s1777 = sand.u32 %s142, 1
        %s1778 = scalar_lea.sflag [#allocation3], %s1777
        %s1779 = sand.u32 %s142, 1
        %s1780 = smul.addr %s1779, 24
        %s1781 = scalar_lea.vmem [#allocation2], %s1780
        // Predicated region
        $region37: #{tpu_custom_call.1} parent=35 // pred_check
          %p1782 = pneg %p152
        $region38: #{tpu_custom_call.1} parent=35 // pred_check_branch
          %1784 = sbr.rel (%p1782) target = $region40
        $region39: #{tpu_custom_call.1} parent=35 // pred_region
          %s1785 = smul.u32 3, %s23
          %s1787 = ssub.s32 384, 384
          %1788 = vsyncadd %s1778, %s1787
          %s1789 = smul.addr %s22, 3
          %s1790 = sadd.s32 %s1785, %s1789
          %s1791 = smul.addr %s1790, 128
          %s1792 = scalar_lea.hbm %s4, %s1791
          %s1794 = sshll.u32 %s1781, 4
          %s1795 = int_to_ptr.vmem [resolvable:$true] %s1794
          %1797 = dma.vmem_to_hbm [thread:$0]  %s1795, 384, %s1792, %s1778
        $region40: #{tpu_custom_call.1} parent=35 // pred_fallthru
          _
      $region36: #{tpu_custom_call.1} parent=5 // pred_fallthru
        _
      %p1798 = scmp.le.s32.totalorder 2, %s13
      // Predicated region
      $region41: #{tpu_custom_call.1} parent=5 // pred_check
        %p1799 = pneg %p1798
      $region42: #{tpu_custom_call.1} parent=5 // pred_check_branch
        %1801 = sbr.rel (%p1799) target = $region44
      $region43: #{tpu_custom_call.1} parent=5 // pred_region
        %s1802 = ssub.s32 %s13, 2
        // Predicated region
        $region45: #{tpu_custom_call.1} parent=43 // pred_check
          %p1803 = pneg %p158
        $region46: #{tpu_custom_call.1} parent=43 // pred_check_branch
          %1805 = sbr.rel (%p1803) target = $region48
        $region47: #{tpu_custom_call.1} parent=43 // pred_region
          %s1806 = sand.u32 %s143, 1
          %s1807 = scalar_lea.sflag [#allocation3], %s1806
          %s1808 = sand.u32 %s143, 1
          %s1809 = smul.addr %s1808, 24
          %s1810 = scalar_lea.vmem [#allocation2], %s1809
          %1811 = dma.done %s1807, 384
        $region48: #{tpu_custom_call.1} parent=43 // pred_fallthru
          _
      $region44: #{tpu_custom_call.1} parent=5 // pred_fallthru
        _
    $region6: #{tpu_custom_call.1} parent=1 // loop_footer
      %s17 = sadd.s32 1, %s13
    $region7: #{tpu_custom_call.1} parent=1 // loop_footer_branch
      %12 = sbr.rel target = $region3
    $region8: #{tpu_custom_call.1} parent=1 // loop_exit
      _
    %1812 = vsyncpa [#allocation3], 1
    %s1813 = scalar_lea.sflag [#allocation3], 1
    %1814 = vsyncpa %s1813, 1

</llo_original>
